<compile_context>
chip_gen: v7x
topology: tpu7x:2x2x1
jax: 0.10.0
libtpu: 0.0.40
codegen_flags: <defaults>
</compile_context>

<pallas_src>
import functools

import jax
import jax.numpy as jnp
from jax import lax
from jax.experimental import pallas as pl
from jax.experimental.pallas import tpu as pltpu


# -----------------------------------------------------------------------------
# Pallas kernel: 2-layer LSTM recurrence over one time tile, state carried in
# VMEM scratch across grid steps.
# -----------------------------------------------------------------------------
def _elstm_kernel(xw0_ref,                 # [T, 4H]  precomputed x@Wih0 + b0 (f32)
                  whh0_ref,                # [H, 4H]  layer-0 recurrent weight (bf16)
                  wih1_ref,                # [H, 4H]  layer-1 input weight (bf16)
                  whh1_ref,                # [H, 4H]  layer-1 recurrent weight (bf16)
                  b1_ref,                  # [1, 4H]  layer-1 fused bias (f32)
                  h_out_ref, c_out_ref,    # outputs: [2, H] each (f32)
                  h0_ref, c0_ref, h1_ref, c1_ref,   # VMEM scratch: [1, H] each
                  *, hidden_size, time_tile, seq_len, needs_mask):
    H = hidden_size
    T = time_tile
    tile = pl.program_id(0)

    # --- init recurrent state on the first time tile (PyTorch default: zeros) ---
    @pl.when(tile == 0)
    def _init():
        zeros = jnp.zeros((1, H), jnp.float32)
        h0_ref[...] = zeros
        c0_ref[...] = zeros
        h1_ref[...] = zeros
        c1_ref[...] = zeros

    # --- hoist weight / bias loads out of the time loop (small H: stays in vregs) ---
    whh0 = whh0_ref[...]          # bf16 [H, 4H]
    wih1 = wih1_ref[...]          # bf16 [H, 4H]
    whh1 = whh1_ref[...]          # bf16 [H, 4H]
    b1 = b1_ref[...]              # f32  [1, 4H]

    def activations(gates):
        # gate order (i, f, o, g): one sigmoid over a contiguous 3H slice, one tanh.
        sig = jax.nn.sigmoid(gates[:, 0:3 * H])
        i = sig[:, 0 * H:1 * H]
        f = sig[:, 1 * H:2 * H]
        o = sig[:, 2 * H:3 * H]
        g = jnp.tanh(gates[:, 3 * H:4 * H])
        return i, f, o, g

    def step(t, carry):
        h0, c0, h1, c1 = carry

        # ---- layer 0: x-projection precomputed; only the recurrent matmul remains
        g0 = xw0_ref[pl.ds(t, 1), :] + jnp.dot(
            h0.astype(jnp.bfloat16), whh0, preferred_element_type=jnp.float32)
        i0, f0, o0, gg0 = activations(g0)
        c0n = f0 * c0 + i0 * gg0
        h0n = o0 * jnp.tanh(c0n)

        # ---- layer 1: two small dots (no lane-concat on the serial chain)
        g1 = (jnp.dot(h0n.astype(jnp.bfloat16), wih1,
                      preferred_element_type=jnp.float32)
              + jnp.dot(h1.astype(jnp.bfloat16), whh1,
                        preferred_element_type=jnp.float32)
              + b1)
        i1, f1, o1, gg1 = activations(g1)
        c1n = f1 * c1 + i1 * gg1
        h1n = o1 * jnp.tanh(c1n)

        if needs_mask:
            # only emitted (statically) when the sequence was padded to a tile multiple
            keep = (tile * T + t) < seq_len
            h0n = jnp.where(keep, h0n, h0)
            c0n = jnp.where(keep, c0n, c0)
            h1n = jnp.where(keep, h1n, h1)
            c1n = jnp.where(keep, c1n, c1)
        return (h0n, c0n, h1n, c1n)

    carry0 = (h0_ref[...], c0_ref[...], h1_ref[...], c1_ref[...])
    # unroll so layer-1 of step t can overlap layer-0 of step t+1 (T is a multiple of 8)
    h0, c0, h1, c1 = lax.fori_loop(0, T, step, carry0, unroll=8)

    # carry state to the next time tile
    h0_ref[...] = h0
    c0_ref[...] = c0
    h1_ref[...] = h1
    c1_ref[...] = c1

    # emit (h_last, c_last) on the final tile
    @pl.when(tile == pl.num_programs(0) - 1)
    def _finalize():
        h_out_ref[0:1, :] = h0
        h_out_ref[1:2, :] = h1
        c_out_ref[0:1, :] = c0
        c_out_ref[1:2, :] = c1


# -----------------------------------------------------------------------------
# Wrapper: weight prep (transpose, gate permute, bias fusion, bf16 cast),
# batched layer-0 projection, time-tiled pallas_call.
# -----------------------------------------------------------------------------
def _round_up(v, m):
    return ((v + m - 1) // m) * m


def _choose_time_tile(seq_len):
    # sublane-aligned; cap the per-tile xw0 block so long sequences get pipelined.
    return min(_round_up(seq_len, 8), 128)


def _permute_ifog(w):
    """Reorder gate blocks along the last axis from PyTorch (i,f,g,o) to (i,f,o,g)."""
    i, f, g, o = jnp.split(w, 4, axis=-1)
    return jnp.concatenate([i, f, o, g], axis=-1)


@functools.partial(jax.jit, static_argnames=("hidden_size",))
def elstm_forward(frame_features, params, hidden_size):
    """frame_features: [seq_len, 1, input_size] -> (h_last, c_last), each [2, 1, H]."""
    S, B, I = frame_features.shape
    H = hidden_size
    x = frame_features.reshape(S, I).astype(jnp.float32)   # batch=1 squeezed

    # PyTorch layout is [4H, in]; transpose to [in, 4H], permute gates, fuse biases.
    wih0 = _permute_ifog(params["weight_ih_l0"].T).astype(jnp.float32)     # [I, 4H]
    whh0 = _permute_ifog(params["weight_hh_l0"].T).astype(jnp.bfloat16)    # [H, 4H]
    b0 = _permute_ifog(
        (params["bias_ih_l0"] + params["bias_hh_l0"]).reshape(1, 4 * H)
    ).astype(jnp.float32)
    wih1 = _permute_ifog(params["weight_ih_l1"].T).astype(jnp.bfloat16)    # [H, 4H]
    whh1 = _permute_ifog(params["weight_hh_l1"].T).astype(jnp.bfloat16)    # [H, 4H]
    b1 = _permute_ifog(
        (params["bias_ih_l1"] + params["bias_hh_l1"]).reshape(1, 4 * H)
    ).astype(jnp.float32)

    # Hoist the non-recurrent layer-0 input projection out of the recurrence:
    # one batched matmul (off the serial chain, so full precision is free here).
    xw0 = jnp.dot(x, wih0, preferred_element_type=jnp.float32,
                  precision=lax.Precision.HIGHEST) + b0                    # [S, 4H]

    # Time tiling: grid over time, recurrent state carried in VMEM scratch.
    T = _choose_time_tile(S)
    S_pad = _round_up(S, T)
    n_tiles = S_pad // T
    needs_mask = S_pad != S
    if needs_mask:
        xw0 = jnp.pad(xw0, ((0, S_pad - S), (0, 0)))

    kernel = functools.partial(
        _elstm_kernel, hidden_size=H, time_tile=T, seq_len=S, needs_mask=needs_mask)

    # Raise the scoped VMEM limit only when the resident footprint needs it
    # (bf16 weights + double-buffered xw0 tiles; irrelevant at test shapes).
    est_bytes = (2 * (T * 4 * H * 4)            # xw0 tiles, double-buffered
                 + 2 * (3 * H * 4 * H * 2)      # whh0 + wih1 + whh1 (bf16), dbl-buffered
                 + 2 * (4 * H * 4)              # b1
                 + 8 * H * 4 + (1 << 20))       # scratch/outputs + slack
    cp_kwargs = dict(dimension_semantics=("arbitrary",))
    if est_bytes > 24 * 1024 * 1024:
        cp_kwargs["vmem_limit_bytes"] = min(int(est_bytes * 3 // 2), 100 * 1024 * 1024)

    h_last, c_last = pl.pallas_call(
        kernel,
        out_shape=(jax.ShapeDtypeStruct((2, H), jnp.float32),
                   jax.ShapeDtypeStruct((2, H), jnp.float32)),
        grid_spec=pltpu.PrefetchScalarGridSpec(
            num_scalar_prefetch=0,
            grid=(n_tiles,),
            in_specs=[
                pl.BlockSpec((T, 4 * H), lambda i: (i, 0)),       # xw0:  tiled over time
                pl.BlockSpec((H, 4 * H), lambda i: (0, 0)),       # whh0: pinned
                pl.BlockSpec((H, 4 * H), lambda i: (0, 0)),       # wih1: pinned
                pl.BlockSpec((H, 4 * H), lambda i: (0, 0)),       # whh1: pinned
                pl.BlockSpec((1, 4 * H), lambda i: (0, 0)),       # b1:   pinned
            ],
            out_specs=[pl.BlockSpec((2, H), lambda i: (0, 0)),
                       pl.BlockSpec((2, H), lambda i: (0, 0))],
            scratch_shapes=[pltpu.VMEM((1, H), jnp.float32)] * 4,
        ),
        compiler_params=pltpu.CompilerParams(**cp_kwargs),
    )(xw0, whh0, wih1, whh1, b1)

    return h_last.reshape(2, 1, H), c_last.reshape(2, 1, H)


# -----------------------------------------------------------------------------
# Deterministic parameter init (mirrors nn.LSTM's U(-1/sqrt(H), 1/sqrt(H))).
# -----------------------------------------------------------------------------
def init_elstm_params(key, input_size, hidden_size):
    H = hidden_size
    bound = 1.0 / jnp.sqrt(H)
    shapes = {
        "weight_ih_l0": (4 * H, input_size),
        "weight_hh_l0": (4 * H, H),
        "bias_ih_l0": (4 * H,),
        "bias_hh_l0": (4 * H,),
        "weight_ih_l1": (4 * H, H),
        "weight_hh_l1": (4 * H, H),
        "bias_ih_l1": (4 * H,),
        "bias_hh_l1": (4 * H,),
        # linear_mu / linear_var exist in eLSTM.__init__ but are unused in forward.
        "linear_mu_w": (H, H), "linear_mu_b": (H,),
        "linear_var_w": (H, H), "linear_var_b": (H,),
    }
    params = {}
    keys = jax.random.split(key, len(shapes))
    for k, (name, shp) in zip(keys, shapes.items()):
        params[name] = jax.random.uniform(k, shp, jnp.float32, -bound, bound)
    return params


# -----------------------------------------------------------------------------
# Pure-JAX reference (full f32, HIGHEST precision) — PyTorch (i,f,g,o) math.
# -----------------------------------------------------------------------------
def elstm_reference(frame_features, params, hidden_size):
    S, B, I = frame_features.shape
    H = hidden_size
    x = frame_features.reshape(S, I).astype(jnp.float32)

    def mm(a, b):
        return jnp.dot(a, b, precision=lax.Precision.HIGHEST)

    def cell(x_t, h, c, wih, whh, bih, bhh):
        gates = mm(x_t, wih.T) + bih + mm(h, whh.T) + bhh
        i = jax.nn.sigmoid(gates[:, 0 * H:1 * H])
        f = jax.nn.sigmoid(gates[:, 1 * H:2 * H])
        g = jnp.tanh(gates[:, 2 * H:3 * H])
        o = jax.nn.sigmoid(gates[:, 3 * H:4 * H])
        c_new = f * c + i * g
        return o * jnp.tanh(c_new), c_new

    h0 = c0 = h1 = c1 = jnp.zeros((1, H), jnp.float32)
    for t in range(S):
        x_t = x[t:t + 1]
        h0, c0 = cell(x_t, h0, c0, params["weight_ih_l0"], params["weight_hh_l0"],
                      params["bias_ih_l0"], params["bias_hh_l0"])
        h1, c1 = cell(h0, h1, c1, params["weight_ih_l1"], params["weight_hh_l1"],
                      params["bias_ih_l1"], params["bias_hh_l1"])
    h_last = jnp.stack([h0, h1], axis=0)   # [2, 1, H]
    c_last = jnp.stack([c0, c1], axis=0)
    return h_last, c_last


if __name__ == "__main__":
    seq_len, input_size, hidden_size = 8, 32, 32

    key = jax.random.PRNGKey(0)
    k_x, k_p = jax.random.split(key)
    frame_features = jax.random.normal(k_x, (seq_len, 1, input_size), jnp.float32)
    params = init_elstm_params(k_p, input_size, hidden_size)

    h_last, c_last = elstm_forward(frame_features, params, hidden_size)
    jax.block_until_ready((h_last, c_last))

    h_ref, c_ref = elstm_reference(frame_features, params, hidden_size)
    assert h_last.shape == (2, 1, hidden_size) and c_last.shape == (2, 1, hidden_size)
    # tolerance accounts for bf16-operand recurrent matmuls (f32 accumulate).
    assert jnp.allclose(h_last, h_ref, atol=2e-2, rtol=2e-2), \
        f"h mismatch: max abs err {jnp.max(jnp.abs(h_last - h_ref))}"
    assert jnp.allclose(c_last, c_ref, atol=2e-2, rtol=2e-2), \
        f"c mismatch: max abs err {jnp.max(jnp.abs(c_last - c_ref))}"

    print("KERNEL_OK")
</pallas_src>

<mosaic_0001>
module attributes {stable_mosaic.version = 11 : i64} {
  func.func @_elstm_kernel(%arg0: i32, %arg1: memref<8x128xf32, #tpu.memory_space<vmem>>, %arg2: memref<32x128xbf16, #tpu.memory_space<vmem>>, %arg3: memref<32x128xbf16, #tpu.memory_space<vmem>>, %arg4: memref<32x128xbf16, #tpu.memory_space<vmem>>, %arg5: memref<1x128xf32, #tpu.memory_space<vmem>>, %arg6: memref<2x32xf32, #tpu.memory_space<vmem>>, %arg7: memref<2x32xf32, #tpu.memory_space<vmem>>, %arg8: memref<1x32xf32, #tpu.memory_space<vmem>>, %arg9: memref<1x32xf32, #tpu.memory_space<vmem>>, %arg10: memref<1x32xf32, #tpu.memory_space<vmem>>, %arg11: memref<1x32xf32, #tpu.memory_space<vmem>>) attributes {dimension_semantics = [#tpu.dimension_semantics<arbitrary>], iteration_bounds = array<i64: 1>, scalar_prefetch = 0 : i64, scratch_operands = 4 : i64, tpu.core_type = #tpu.core_type<tc>, window_params = [{transform_indices = @transform_0, window_bounds = array<i64: 8, 128>}, {pipeline_mode = #tpu.pipeline_mode<synchronous>, transform_indices = @transform_1, window_bounds = array<i64: 32, 128>}, {pipeline_mode = #tpu.pipeline_mode<synchronous>, transform_indices = @transform_2, window_bounds = array<i64: 32, 128>}, {pipeline_mode = #tpu.pipeline_mode<synchronous>, transform_indices = @transform_3, window_bounds = array<i64: 32, 128>}, {pipeline_mode = #tpu.pipeline_mode<synchronous>, transform_indices = @transform_4, window_bounds = array<i64: 1, 128>}, {pipeline_mode = #tpu.pipeline_mode<synchronous>, transform_indices = @transform_5, window_bounds = array<i64: 2, 32>}, {pipeline_mode = #tpu.pipeline_mode<synchronous>, transform_indices = @transform_6, window_bounds = array<i64: 2, 32>}]} {
    %c0_i32 = arith.constant 0 : i32
    %0 = arith.cmpi eq, %arg0, %c0_i32 : i32
    %1 = arith.extui %0 : i1 to i32
    %c0_i32_0 = arith.constant 0 : i32
    %2 = arith.cmpi ne, %1, %c0_i32_0 : i32
    scf.if %2 {
      %cst_74 = arith.constant 0.000000e+00 : f32
      %362 = vector.broadcast %cst_74 : f32 to vector<1x32xf32>
      %c0_75 = arith.constant 0 : index
      %c0_76 = arith.constant 0 : index
      %363 = vector.load %arg8[%c0_75, %c0_76] : memref<1x32xf32, #tpu.memory_space<vmem>>, vector<1x32xf32>
      tpu.vector_store %arg8[%c0_75, %c0_76], %362 {strides = array<i32>} : memref<1x32xf32, #tpu.memory_space<vmem>>, vector<1x32xf32>,
      %c0_77 = arith.constant 0 : index
      %c0_78 = arith.constant 0 : index
      %364 = vector.load %arg9[%c0_77, %c0_78] : memref<1x32xf32, #tpu.memory_space<vmem>>, vector<1x32xf32>
      tpu.vector_store %arg9[%c0_77, %c0_78], %362 {strides = array<i32>} : memref<1x32xf32, #tpu.memory_space<vmem>>, vector<1x32xf32>,
      %c0_79 = arith.constant 0 : index
      %c0_80 = arith.constant 0 : index
      %365 = vector.load %arg10[%c0_79, %c0_80] : memref<1x32xf32, #tpu.memory_space<vmem>>, vector<1x32xf32>
      tpu.vector_store %arg10[%c0_79, %c0_80], %362 {strides = array<i32>} : memref<1x32xf32, #tpu.memory_space<vmem>>, vector<1x32xf32>,
      %c0_81 = arith.constant 0 : index
      %c0_82 = arith.constant 0 : index
      %366 = vector.load %arg11[%c0_81, %c0_82] : memref<1x32xf32, #tpu.memory_space<vmem>>, vector<1x32xf32>
      tpu.vector_store %arg11[%c0_81, %c0_82], %362 {strides = array<i32>} : memref<1x32xf32, #tpu.memory_space<vmem>>, vector<1x32xf32>,
    } else {
    }
    %c0 = arith.constant 0 : index
    %c0_1 = arith.constant 0 : index
    %3 = vector.load %arg2[%c0, %c0_1] : memref<32x128xbf16, #tpu.memory_space<vmem>>, vector<32x128xbf16>
    %c0_2 = arith.constant 0 : index
    %c0_3 = arith.constant 0 : index
    %4 = vector.load %arg3[%c0_2, %c0_3] : memref<32x128xbf16, #tpu.memory_space<vmem>>, vector<32x128xbf16>
    %c0_4 = arith.constant 0 : index
    %c0_5 = arith.constant 0 : index
    %5 = vector.load %arg4[%c0_4, %c0_5] : memref<32x128xbf16, #tpu.memory_space<vmem>>, vector<32x128xbf16>
    %c0_6 = arith.constant 0 : index
    %c0_7 = arith.constant 0 : index
    %6 = vector.load %arg5[%c0_6, %c0_7] : memref<1x128xf32, #tpu.memory_space<vmem>>, vector<1x128xf32>
    %c0_8 = arith.constant 0 : index
    %c0_9 = arith.constant 0 : index
    %7 = vector.load %arg8[%c0_8, %c0_9] : memref<1x32xf32, #tpu.memory_space<vmem>>, vector<1x32xf32>
    %c0_10 = arith.constant 0 : index
    %c0_11 = arith.constant 0 : index
    %8 = vector.load %arg9[%c0_10, %c0_11] : memref<1x32xf32, #tpu.memory_space<vmem>>, vector<1x32xf32>
    %c0_12 = arith.constant 0 : index
    %c0_13 = arith.constant 0 : index
    %9 = vector.load %arg10[%c0_12, %c0_13] : memref<1x32xf32, #tpu.memory_space<vmem>>, vector<1x32xf32>
    %c0_14 = arith.constant 0 : index
    %c0_15 = arith.constant 0 : index
    %10 = vector.load %arg11[%c0_14, %c0_15] : memref<1x32xf32, #tpu.memory_space<vmem>>, vector<1x32xf32>
    %c0_i32_16 = arith.constant 0 : i32
    %11 = arith.index_cast %c0_i32_16 : i32 to index
    %c0_17 = arith.constant 0 : index
    %12 = vector.load %arg1[%11, %c0_17] : memref<8x128xf32, #tpu.memory_space<vmem>>, vector<1x128xf32>
    %13 = arith.truncf %7 : vector<1x32xf32> to vector<1x32xbf16>
    %cst = arith.constant dense<0.000000e+00> : vector<1x128xf32>
    %14 = tpu.matmul %13, %3, %cst {dimension_numbers = #tpu.dot_dimension_numbers<[1], [0], [0], [1], [0, 0, 1, 1], [], []>} : vector<1x32xbf16>, vector<32x128xbf16>, vector<1x128xf32> -> vector<1x128xf32>
    %15 = arith.addf %12, %14 : vector<1x128xf32>
    %16 = vector.extract_strided_slice %15 {offsets = [0, 0], sizes = [1, 96], strides = [1, 1]} : vector<1x128xf32> to vector<1x96xf32>
    %17 = arith.negf %16 : vector<1x96xf32>
    %18 = math.exp %17 : vector<1x96xf32>
    %cst_18 = arith.constant 1.000000e+00 : f32
    %19 = vector.broadcast %cst_18 : f32 to vector<1x96xf32>
    %20 = arith.addf %19, %18 : vector<1x96xf32>
    %21 = arith.divf %19, %20 : vector<1x96xf32>
    %22 = vector.extract_strided_slice %21 {offsets = [0, 0], sizes = [1, 32], strides = [1, 1]} : vector<1x96xf32> to vector<1x32xf32>
    %23 = vector.extract_strided_slice %21 {offsets = [0, 32], sizes = [1, 32], strides = [1, 1]} : vector<1x96xf32> to vector<1x32xf32>
    %24 = vector.extract_strided_slice %21 {offsets = [0, 64], sizes = [1, 32], strides = [1, 1]} : vector<1x96xf32> to vector<1x32xf32>
    %25 = vector.extract_strided_slice %15 {offsets = [0, 96], sizes = [1, 32], strides = [1, 1]} : vector<1x128xf32> to vector<1x32xf32>
    %26 = math.tanh %25 : vector<1x32xf32>
    %27 = arith.mulf %23, %8 : vector<1x32xf32>
    %28 = arith.mulf %22, %26 : vector<1x32xf32>
    %29 = arith.addf %27, %28 : vector<1x32xf32>
    %30 = math.tanh %29 : vector<1x32xf32>
    %31 = arith.mulf %24, %30 : vector<1x32xf32>
    %32 = arith.truncf %31 : vector<1x32xf32> to vector<1x32xbf16>
    %cst_19 = arith.constant dense<0.000000e+00> : vector<1x128xf32>
    %33 = tpu.matmul %32, %4, %cst_19 {dimension_numbers = #tpu.dot_dimension_numbers<[1], [0], [0], [1], [0, 0, 1, 1], [], []>} : vector<1x32xbf16>, vector<32x128xbf16>, vector<1x128xf32> -> vector<1x128xf32>
    %34 = arith.truncf %9 : vector<1x32xf32> to vector<1x32xbf16>
    %cst_20 = arith.constant dense<0.000000e+00> : vector<1x128xf32>
    %35 = tpu.matmul %34, %5, %cst_20 {dimension_numbers = #tpu.dot_dimension_numbers<[1], [0], [0], [1], [0, 0, 1, 1], [], []>} : vector<1x32xbf16>, vector<32x128xbf16>, vector<1x128xf32> -> vector<1x128xf32>
    %36 = arith.addf %33, %35 : vector<1x128xf32>
    %37 = arith.addf %36, %6 : vector<1x128xf32>
    %38 = vector.extract_strided_slice %37 {offsets = [0, 0], sizes = [1, 96], strides = [1, 1]} : vector<1x128xf32> to vector<1x96xf32>
    %39 = arith.negf %38 : vector<1x96xf32>
    %40 = math.exp %39 : vector<1x96xf32>
    %cst_21 = arith.constant 1.000000e+00 : f32
    %41 = vector.broadcast %cst_21 : f32 to vector<1x96xf32>
    %42 = arith.addf %41, %40 : vector<1x96xf32>
    %43 = arith.divf %41, %42 : vector<1x96xf32>
    %44 = vector.extract_strided_slice %43 {offsets = [0, 0], sizes = [1, 32], strides = [1, 1]} : vector<1x96xf32> to vector<1x32xf32>
    %45 = vector.extract_strided_slice %43 {offsets = [0, 32], sizes = [1, 32], strides = [1, 1]} : vector<1x96xf32> to vector<1x32xf32>
    %46 = vector.extract_strided_slice %43 {offsets = [0, 64], sizes = [1, 32], strides = [1, 1]} : vector<1x96xf32> to vector<1x32xf32>
    %47 = vector.extract_strided_slice %37 {offsets = [0, 96], sizes = [1, 32], strides = [1, 1]} : vector<1x128xf32> to vector<1x32xf32>
    %48 = math.tanh %47 : vector<1x32xf32>
    %49 = arith.mulf %45, %10 : vector<1x32xf32>
    %50 = arith.mulf %44, %48 : vector<1x32xf32>
    %51 = arith.addf %49, %50 : vector<1x32xf32>
    %52 = math.tanh %51 : vector<1x32xf32>
    %53 = arith.mulf %46, %52 : vector<1x32xf32>
    %c1_i32 = arith.constant 1 : i32
    %54 = arith.index_cast %c1_i32 : i32 to index
    %c0_22 = arith.constant 0 : index
    %55 = vector.load %arg1[%54, %c0_22] : memref<8x128xf32, #tpu.memory_space<vmem>>, vector<1x128xf32>
    %56 = arith.truncf %31 : vector<1x32xf32> to vector<1x32xbf16>
    %cst_23 = arith.constant dense<0.000000e+00> : vector<1x128xf32>
    %57 = tpu.matmul %56, %3, %cst_23 {dimension_numbers = #tpu.dot_dimension_numbers<[1], [0], [0], [1], [0, 0, 1, 1], [], []>} : vector<1x32xbf16>, vector<32x128xbf16>, vector<1x128xf32> -> vector<1x128xf32>
    %58 = arith.addf %55, %57 : vector<1x128xf32>
    %59 = vector.extract_strided_slice %58 {offsets = [0, 0], sizes = [1, 96], strides = [1, 1]} : vector<1x128xf32> to vector<1x96xf32>
    %60 = arith.negf %59 : vector<1x96xf32>
    %61 = math.exp %60 : vector<1x96xf32>
    %cst_24 = arith.constant 1.000000e+00 : f32
    %62 = vector.broadcast %cst_24 : f32 to vector<1x96xf32>
    %63 = arith.addf %62, %61 : vector<1x96xf32>
    %64 = arith.divf %62, %63 : vector<1x96xf32>
    %65 = vector.extract_strided_slice %64 {offsets = [0, 0], sizes = [1, 32], strides = [1, 1]} : vector<1x96xf32> to vector<1x32xf32>
    %66 = vector.extract_strided_slice %64 {offsets = [0, 32], sizes = [1, 32], strides = [1, 1]} : vector<1x96xf32> to vector<1x32xf32>
    %67 = vector.extract_strided_slice %64 {offsets = [0, 64], sizes = [1, 32], strides = [1, 1]} : vector<1x96xf32> to vector<1x32xf32>
    %68 = vector.extract_strided_slice %58 {offsets = [0, 96], sizes = [1, 32], strides = [1, 1]} : vector<1x128xf32> to vector<1x32xf32>
    %69 = math.tanh %68 : vector<1x32xf32>
    %70 = arith.mulf %66, %29 : vector<1x32xf32>
    %71 = arith.mulf %65, %69 : vector<1x32xf32>
    %72 = arith.addf %70, %71 : vector<1x32xf32>
    %73 = math.tanh %72 : vector<1x32xf32>
    %74 = arith.mulf %67, %73 : vector<1x32xf32>
    %75 = arith.truncf %74 : vector<1x32xf32> to vector<1x32xbf16>
    %cst_25 = arith.constant dense<0.000000e+00> : vector<1x128xf32>
    %76 = tpu.matmul %75, %4, %cst_25 {dimension_numbers = #tpu.dot_dimension_numbers<[1], [0], [0], [1], [0, 0, 1, 1], [], []>} : vector<1x32xbf16>, vector<32x128xbf16>, vector<1x128xf32> -> vector<1x128xf32>
    %77 = arith.truncf %53 : vector<1x32xf32> to vector<1x32xbf16>
    %cst_26 = arith.constant dense<0.000000e+00> : vector<1x128xf32>
    %78 = tpu.matmul %77, %5, %cst_26 {dimension_numbers = #tpu.dot_dimension_numbers<[1], [0], [0], [1], [0, 0, 1, 1], [], []>} : vector<1x32xbf16>, vector<32x128xbf16>, vector<1x128xf32> -> vector<1x128xf32>
    %79 = arith.addf %76, %78 : vector<1x128xf32>
    %80 = arith.addf %79, %6 : vector<1x128xf32>
    %81 = vector.extract_strided_slice %80 {offsets = [0, 0], sizes = [1, 96], strides = [1, 1]} : vector<1x128xf32> to vector<1x96xf32>
    %82 = arith.negf %81 : vector<1x96xf32>
    %83 = math.exp %82 : vector<1x96xf32>
    %cst_27 = arith.constant 1.000000e+00 : f32
    %84 = vector.broadcast %cst_27 : f32 to vector<1x96xf32>
    %85 = arith.addf %84, %83 : vector<1x96xf32>
    %86 = arith.divf %84, %85 : vector<1x96xf32>
    %87 = vector.extract_strided_slice %86 {offsets = [0, 0], sizes = [1, 32], strides = [1, 1]} : vector<1x96xf32> to vector<1x32xf32>
    %88 = vector.extract_strided_slice %86 {offsets = [0, 32], sizes = [1, 32], strides = [1, 1]} : vector<1x96xf32> to vector<1x32xf32>
    %89 = vector.extract_strided_slice %86 {offsets = [0, 64], sizes = [1, 32], strides = [1, 1]} : vector<1x96xf32> to vector<1x32xf32>
    %90 = vector.extract_strided_slice %80 {offsets = [0, 96], sizes = [1, 32], strides = [1, 1]} : vector<1x128xf32> to vector<1x32xf32>
    %91 = math.tanh %90 : vector<1x32xf32>
    %92 = arith.mulf %88, %51 : vector<1x32xf32>
    %93 = arith.mulf %87, %91 : vector<1x32xf32>
    %94 = arith.addf %92, %93 : vector<1x32xf32>
    %95 = math.tanh %94 : vector<1x32xf32>
    %96 = arith.mulf %89, %95 : vector<1x32xf32>
    %c2_i32 = arith.constant 2 : i32
    %97 = arith.index_cast %c2_i32 : i32 to index
    %c0_28 = arith.constant 0 : index
    %98 = vector.load %arg1[%97, %c0_28] : memref<8x128xf32, #tpu.memory_space<vmem>>, vector<1x128xf32>
    %99 = arith.truncf %74 : vector<1x32xf32> to vector<1x32xbf16>
    %cst_29 = arith.constant dense<0.000000e+00> : vector<1x128xf32>
    %100 = tpu.matmul %99, %3, %cst_29 {dimension_numbers = #tpu.dot_dimension_numbers<[1], [0], [0], [1], [0, 0, 1, 1], [], []>} : vector<1x32xbf16>, vector<32x128xbf16>, vector<1x128xf32> -> vector<1x128xf32>
    %101 = arith.addf %98, %100 : vector<1x128xf32>
    %102 = vector.extract_strided_slice %101 {offsets = [0, 0], sizes = [1, 96], strides = [1, 1]} : vector<1x128xf32> to vector<1x96xf32>
    %103 = arith.negf %102 : vector<1x96xf32>
    %104 = math.exp %103 : vector<1x96xf32>
    %cst_30 = arith.constant 1.000000e+00 : f32
    %105 = vector.broadcast %cst_30 : f32 to vector<1x96xf32>
    %106 = arith.addf %105, %104 : vector<1x96xf32>
    %107 = arith.divf %105, %106 : vector<1x96xf32>
    %108 = vector.extract_strided_slice %107 {offsets = [0, 0], sizes = [1, 32], strides = [1, 1]} : vector<1x96xf32> to vector<1x32xf32>
    %109 = vector.extract_strided_slice %107 {offsets = [0, 32], sizes = [1, 32], strides = [1, 1]} : vector<1x96xf32> to vector<1x32xf32>
    %110 = vector.extract_strided_slice %107 {offsets = [0, 64], sizes = [1, 32], strides = [1, 1]} : vector<1x96xf32> to vector<1x32xf32>
    %111 = vector.extract_strided_slice %101 {offsets = [0, 96], sizes = [1, 32], strides = [1, 1]} : vector<1x128xf32> to vector<1x32xf32>
    %112 = math.tanh %111 : vector<1x32xf32>
    %113 = arith.mulf %109, %72 : vector<1x32xf32>
    %114 = arith.mulf %108, %112 : vector<1x32xf32>
    %115 = arith.addf %113, %114 : vector<1x32xf32>
    %116 = math.tanh %115 : vector<1x32xf32>
    %117 = arith.mulf %110, %116 : vector<1x32xf32>
    %118 = arith.truncf %117 : vector<1x32xf32> to vector<1x32xbf16>
    %cst_31 = arith.constant dense<0.000000e+00> : vector<1x128xf32>
    %119 = tpu.matmul %118, %4, %cst_31 {dimension_numbers = #tpu.dot_dimension_numbers<[1], [0], [0], [1], [0, 0, 1, 1], [], []>} : vector<1x32xbf16>, vector<32x128xbf16>, vector<1x128xf32> -> vector<1x128xf32>
    %120 = arith.truncf %96 : vector<1x32xf32> to vector<1x32xbf16>
    %cst_32 = arith.constant dense<0.000000e+00> : vector<1x128xf32>
    %121 = tpu.matmul %120, %5, %cst_32 {dimension_numbers = #tpu.dot_dimension_numbers<[1], [0], [0], [1], [0, 0, 1, 1], [], []>} : vector<1x32xbf16>, vector<32x128xbf16>, vector<1x128xf32> -> vector<1x128xf32>
    %122 = arith.addf %119, %121 : vector<1x128xf32>
    %123 = arith.addf %122, %6 : vector<1x128xf32>
    %124 = vector.extract_strided_slice %123 {offsets = [0, 0], sizes = [1, 96], strides = [1, 1]} : vector<1x128xf32> to vector<1x96xf32>
    %125 = arith.negf %124 : vector<1x96xf32>
    %126 = math.exp %125 : vector<1x96xf32>
    %cst_33 = arith.constant 1.000000e+00 : f32
    %127 = vector.broadcast %cst_33 : f32 to vector<1x96xf32>
    %128 = arith.addf %127, %126 : vector<1x96xf32>
    %129 = arith.divf %127, %128 : vector<1x96xf32>
    %130 = vector.extract_strided_slice %129 {offsets = [0, 0], sizes = [1, 32], strides = [1, 1]} : vector<1x96xf32> to vector<1x32xf32>
    %131 = vector.extract_strided_slice %129 {offsets = [0, 32], sizes = [1, 32], strides = [1, 1]} : vector<1x96xf32> to vector<1x32xf32>
    %132 = vector.extract_strided_slice %129 {offsets = [0, 64], sizes = [1, 32], strides = [1, 1]} : vector<1x96xf32> to vector<1x32xf32>
    %133 = vector.extract_strided_slice %123 {offsets = [0, 96], sizes = [1, 32], strides = [1, 1]} : vector<1x128xf32> to vector<1x32xf32>
    %134 = math.tanh %133 : vector<1x32xf32>
    %135 = arith.mulf %131, %94 : vector<1x32xf32>
    %136 = arith.mulf %130, %134 : vector<1x32xf32>
    %137 = arith.addf %135, %136 : vector<1x32xf32>
    %138 = math.tanh %137 : vector<1x32xf32>
    %139 = arith.mulf %132, %138 : vector<1x32xf32>
    %c3_i32 = arith.constant 3 : i32
    %140 = arith.index_cast %c3_i32 : i32 to index
    %c0_34 = arith.constant 0 : index
    %141 = vector.load %arg1[%140, %c0_34] : memref<8x128xf32, #tpu.memory_space<vmem>>, vector<1x128xf32>
    %142 = arith.truncf %117 : vector<1x32xf32> to vector<1x32xbf16>
    %cst_35 = arith.constant dense<0.000000e+00> : vector<1x128xf32>
    %143 = tpu.matmul %142, %3, %cst_35 {dimension_numbers = #tpu.dot_dimension_numbers<[1], [0], [0], [1], [0, 0, 1, 1], [], []>} : vector<1x32xbf16>, vector<32x128xbf16>, vector<1x128xf32> -> vector<1x128xf32>
    %144 = arith.addf %141, %143 : vector<1x128xf32>
    %145 = vector.extract_strided_slice %144 {offsets = [0, 0], sizes = [1, 96], strides = [1, 1]} : vector<1x128xf32> to vector<1x96xf32>
    %146 = arith.negf %145 : vector<1x96xf32>
    %147 = math.exp %146 : vector<1x96xf32>
    %cst_36 = arith.constant 1.000000e+00 : f32
    %148 = vector.broadcast %cst_36 : f32 to vector<1x96xf32>
    %149 = arith.addf %148, %147 : vector<1x96xf32>
    %150 = arith.divf %148, %149 : vector<1x96xf32>
    %151 = vector.extract_strided_slice %150 {offsets = [0, 0], sizes = [1, 32], strides = [1, 1]} : vector<1x96xf32> to vector<1x32xf32>
    %152 = vector.extract_strided_slice %150 {offsets = [0, 32], sizes = [1, 32], strides = [1, 1]} : vector<1x96xf32> to vector<1x32xf32>
    %153 = vector.extract_strided_slice %150 {offsets = [0, 64], sizes = [1, 32], strides = [1, 1]} : vector<1x96xf32> to vector<1x32xf32>
    %154 = vector.extract_strided_slice %144 {offsets = [0, 96], sizes = [1, 32], strides = [1, 1]} : vector<1x128xf32> to vector<1x32xf32>
    %155 = math.tanh %154 : vector<1x32xf32>
    %156 = arith.mulf %152, %115 : vector<1x32xf32>
    %157 = arith.mulf %151, %155 : vector<1x32xf32>
    %158 = arith.addf %156, %157 : vector<1x32xf32>
    %159 = math.tanh %158 : vector<1x32xf32>
    %160 = arith.mulf %153, %159 : vector<1x32xf32>
    %161 = arith.truncf %160 : vector<1x32xf32> to vector<1x32xbf16>
    %cst_37 = arith.constant dense<0.000000e+00> : vector<1x128xf32>
    %162 = tpu.matmul %161, %4, %cst_37 {dimension_numbers = #tpu.dot_dimension_numbers<[1], [0], [0], [1], [0, 0, 1, 1], [], []>} : vector<1x32xbf16>, vector<32x128xbf16>, vector<1x128xf32> -> vector<1x128xf32>
    %163 = arith.truncf %139 : vector<1x32xf32> to vector<1x32xbf16>
    %cst_38 = arith.constant dense<0.000000e+00> : vector<1x128xf32>
    %164 = tpu.matmul %163, %5, %cst_38 {dimension_numbers = #tpu.dot_dimension_numbers<[1], [0], [0], [1], [0, 0, 1, 1], [], []>} : vector<1x32xbf16>, vector<32x128xbf16>, vector<1x128xf32> -> vector<1x128xf32>
    %165 = arith.addf %162, %164 : vector<1x128xf32>
    %166 = arith.addf %165, %6 : vector<1x128xf32>
    %167 = vector.extract_strided_slice %166 {offsets = [0, 0], sizes = [1, 96], strides = [1, 1]} : vector<1x128xf32> to vector<1x96xf32>
    %168 = arith.negf %167 : vector<1x96xf32>
    %169 = math.exp %168 : vector<1x96xf32>
    %cst_39 = arith.constant 1.000000e+00 : f32
    %170 = vector.broadcast %cst_39 : f32 to vector<1x96xf32>
    %171 = arith.addf %170, %169 : vector<1x96xf32>
    %172 = arith.divf %170, %171 : vector<1x96xf32>
    %173 = vector.extract_strided_slice %172 {offsets = [0, 0], sizes = [1, 32], strides = [1, 1]} : vector<1x96xf32> to vector<1x32xf32>
    %174 = vector.extract_strided_slice %172 {offsets = [0, 32], sizes = [1, 32], strides = [1, 1]} : vector<1x96xf32> to vector<1x32xf32>
    %175 = vector.extract_strided_slice %172 {offsets = [0, 64], sizes = [1, 32], strides = [1, 1]} : vector<1x96xf32> to vector<1x32xf32>
    %176 = vector.extract_strided_slice %166 {offsets = [0, 96], sizes = [1, 32], strides = [1, 1]} : vector<1x128xf32> to vector<1x32xf32>
    %177 = math.tanh %176 : vector<1x32xf32>
    %178 = arith.mulf %174, %137 : vector<1x32xf32>
    %179 = arith.mulf %173, %177 : vector<1x32xf32>
    %180 = arith.addf %178, %179 : vector<1x32xf32>
    %181 = math.tanh %180 : vector<1x32xf32>
    %182 = arith.mulf %175, %181 : vector<1x32xf32>
    %c4_i32 = arith.constant 4 : i32
    %183 = arith.index_cast %c4_i32 : i32 to index
    %c0_40 = arith.constant 0 : index
    %184 = vector.load %arg1[%183, %c0_40] : memref<8x128xf32, #tpu.memory_space<vmem>>, vector<1x128xf32>
    %185 = arith.truncf %160 : vector<1x32xf32> to vector<1x32xbf16>
    %cst_41 = arith.constant dense<0.000000e+00> : vector<1x128xf32>
    %186 = tpu.matmul %185, %3, %cst_41 {dimension_numbers = #tpu.dot_dimension_numbers<[1], [0], [0], [1], [0, 0, 1, 1], [], []>} : vector<1x32xbf16>, vector<32x128xbf16>, vector<1x128xf32> -> vector<1x128xf32>
    %187 = arith.addf %184, %186 : vector<1x128xf32>
    %188 = vector.extract_strided_slice %187 {offsets = [0, 0], sizes = [1, 96], strides = [1, 1]} : vector<1x128xf32> to vector<1x96xf32>
    %189 = arith.negf %188 : vector<1x96xf32>
    %190 = math.exp %189 : vector<1x96xf32>
    %cst_42 = arith.constant 1.000000e+00 : f32
    %191 = vector.broadcast %cst_42 : f32 to vector<1x96xf32>
    %192 = arith.addf %191, %190 : vector<1x96xf32>
    %193 = arith.divf %191, %192 : vector<1x96xf32>
    %194 = vector.extract_strided_slice %193 {offsets = [0, 0], sizes = [1, 32], strides = [1, 1]} : vector<1x96xf32> to vector<1x32xf32>
    %195 = vector.extract_strided_slice %193 {offsets = [0, 32], sizes = [1, 32], strides = [1, 1]} : vector<1x96xf32> to vector<1x32xf32>
    %196 = vector.extract_strided_slice %193 {offsets = [0, 64], sizes = [1, 32], strides = [1, 1]} : vector<1x96xf32> to vector<1x32xf32>
    %197 = vector.extract_strided_slice %187 {offsets = [0, 96], sizes = [1, 32], strides = [1, 1]} : vector<1x128xf32> to vector<1x32xf32>
    %198 = math.tanh %197 : vector<1x32xf32>
    %199 = arith.mulf %195, %158 : vector<1x32xf32>
    %200 = arith.mulf %194, %198 : vector<1x32xf32>
    %201 = arith.addf %199, %200 : vector<1x32xf32>
    %202 = math.tanh %201 : vector<1x32xf32>
    %203 = arith.mulf %196, %202 : vector<1x32xf32>
    %204 = arith.truncf %203 : vector<1x32xf32> to vector<1x32xbf16>
    %cst_43 = arith.constant dense<0.000000e+00> : vector<1x128xf32>
    %205 = tpu.matmul %204, %4, %cst_43 {dimension_numbers = #tpu.dot_dimension_numbers<[1], [0], [0], [1], [0, 0, 1, 1], [], []>} : vector<1x32xbf16>, vector<32x128xbf16>, vector<1x128xf32> -> vector<1x128xf32>
    %206 = arith.truncf %182 : vector<1x32xf32> to vector<1x32xbf16>
    %cst_44 = arith.constant dense<0.000000e+00> : vector<1x128xf32>
    %207 = tpu.matmul %206, %5, %cst_44 {dimension_numbers = #tpu.dot_dimension_numbers<[1], [0], [0], [1], [0, 0, 1, 1], [], []>} : vector<1x32xbf16>, vector<32x128xbf16>, vector<1x128xf32> -> vector<1x128xf32>
    %208 = arith.addf %205, %207 : vector<1x128xf32>
    %209 = arith.addf %208, %6 : vector<1x128xf32>
    %210 = vector.extract_strided_slice %209 {offsets = [0, 0], sizes = [1, 96], strides = [1, 1]} : vector<1x128xf32> to vector<1x96xf32>
    %211 = arith.negf %210 : vector<1x96xf32>
    %212 = math.exp %211 : vector<1x96xf32>
    %cst_45 = arith.constant 1.000000e+00 : f32
    %213 = vector.broadcast %cst_45 : f32 to vector<1x96xf32>
    %214 = arith.addf %213, %212 : vector<1x96xf32>
    %215 = arith.divf %213, %214 : vector<1x96xf32>
    %216 = vector.extract_strided_slice %215 {offsets = [0, 0], sizes = [1, 32], strides = [1, 1]} : vector<1x96xf32> to vector<1x32xf32>
    %217 = vector.extract_strided_slice %215 {offsets = [0, 32], sizes = [1, 32], strides = [1, 1]} : vector<1x96xf32> to vector<1x32xf32>
    %218 = vector.extract_strided_slice %215 {offsets = [0, 64], sizes = [1, 32], strides = [1, 1]} : vector<1x96xf32> to vector<1x32xf32>
    %219 = vector.extract_strided_slice %209 {offsets = [0, 96], sizes = [1, 32], strides = [1, 1]} : vector<1x128xf32> to vector<1x32xf32>
    %220 = math.tanh %219 : vector<1x32xf32>
    %221 = arith.mulf %217, %180 : vector<1x32xf32>
    %222 = arith.mulf %216, %220 : vector<1x32xf32>
    %223 = arith.addf %221, %222 : vector<1x32xf32>
    %224 = math.tanh %223 : vector<1x32xf32>
    %225 = arith.mulf %218, %224 : vector<1x32xf32>
    %c5_i32 = arith.constant 5 : i32
    %226 = arith.index_cast %c5_i32 : i32 to index
    %c0_46 = arith.constant 0 : index
    %227 = vector.load %arg1[%226, %c0_46] : memref<8x128xf32, #tpu.memory_space<vmem>>, vector<1x128xf32>
    %228 = arith.truncf %203 : vector<1x32xf32> to vector<1x32xbf16>
    %cst_47 = arith.constant dense<0.000000e+00> : vector<1x128xf32>
    %229 = tpu.matmul %228, %3, %cst_47 {dimension_numbers = #tpu.dot_dimension_numbers<[1], [0], [0], [1], [0, 0, 1, 1], [], []>} : vector<1x32xbf16>, vector<32x128xbf16>, vector<1x128xf32> -> vector<1x128xf32>
    %230 = arith.addf %227, %229 : vector<1x128xf32>
    %231 = vector.extract_strided_slice %230 {offsets = [0, 0], sizes = [1, 96], strides = [1, 1]} : vector<1x128xf32> to vector<1x96xf32>
    %232 = arith.negf %231 : vector<1x96xf32>
    %233 = math.exp %232 : vector<1x96xf32>
    %cst_48 = arith.constant 1.000000e+00 : f32
    %234 = vector.broadcast %cst_48 : f32 to vector<1x96xf32>
    %235 = arith.addf %234, %233 : vector<1x96xf32>
    %236 = arith.divf %234, %235 : vector<1x96xf32>
    %237 = vector.extract_strided_slice %236 {offsets = [0, 0], sizes = [1, 32], strides = [1, 1]} : vector<1x96xf32> to vector<1x32xf32>
    %238 = vector.extract_strided_slice %236 {offsets = [0, 32], sizes = [1, 32], strides = [1, 1]} : vector<1x96xf32> to vector<1x32xf32>
    %239 = vector.extract_strided_slice %236 {offsets = [0, 64], sizes = [1, 32], strides = [1, 1]} : vector<1x96xf32> to vector<1x32xf32>
    %240 = vector.extract_strided_slice %230 {offsets = [0, 96], sizes = [1, 32], strides = [1, 1]} : vector<1x128xf32> to vector<1x32xf32>
    %241 = math.tanh %240 : vector<1x32xf32>
    %242 = arith.mulf %238, %201 : vector<1x32xf32>
    %243 = arith.mulf %237, %241 : vector<1x32xf32>
    %244 = arith.addf %242, %243 : vector<1x32xf32>
    %245 = math.tanh %244 : vector<1x32xf32>
    %246 = arith.mulf %239, %245 : vector<1x32xf32>
    %247 = arith.truncf %246 : vector<1x32xf32> to vector<1x32xbf16>
    %cst_49 = arith.constant dense<0.000000e+00> : vector<1x128xf32>
    %248 = tpu.matmul %247, %4, %cst_49 {dimension_numbers = #tpu.dot_dimension_numbers<[1], [0], [0], [1], [0, 0, 1, 1], [], []>} : vector<1x32xbf16>, vector<32x128xbf16>, vector<1x128xf32> -> vector<1x128xf32>
    %249 = arith.truncf %225 : vector<1x32xf32> to vector<1x32xbf16>
    %cst_50 = arith.constant dense<0.000000e+00> : vector<1x128xf32>
    %250 = tpu.matmul %249, %5, %cst_50 {dimension_numbers = #tpu.dot_dimension_numbers<[1], [0], [0], [1], [0, 0, 1, 1], [], []>} : vector<1x32xbf16>, vector<32x128xbf16>, vector<1x128xf32> -> vector<1x128xf32>
    %251 = arith.addf %248, %250 : vector<1x128xf32>
    %252 = arith.addf %251, %6 : vector<1x128xf32>
    %253 = vector.extract_strided_slice %252 {offsets = [0, 0], sizes = [1, 96], strides = [1, 1]} : vector<1x128xf32> to vector<1x96xf32>
    %254 = arith.negf %253 : vector<1x96xf32>
    %255 = math.exp %254 : vector<1x96xf32>
    %cst_51 = arith.constant 1.000000e+00 : f32
    %256 = vector.broadcast %cst_51 : f32 to vector<1x96xf32>
    %257 = arith.addf %256, %255 : vector<1x96xf32>
    %258 = arith.divf %256, %257 : vector<1x96xf32>
    %259 = vector.extract_strided_slice %258 {offsets = [0, 0], sizes = [1, 32], strides = [1, 1]} : vector<1x96xf32> to vector<1x32xf32>
    %260 = vector.extract_strided_slice %258 {offsets = [0, 32], sizes = [1, 32], strides = [1, 1]} : vector<1x96xf32> to vector<1x32xf32>
    %261 = vector.extract_strided_slice %258 {offsets = [0, 64], sizes = [1, 32], strides = [1, 1]} : vector<1x96xf32> to vector<1x32xf32>
    %262 = vector.extract_strided_slice %252 {offsets = [0, 96], sizes = [1, 32], strides = [1, 1]} : vector<1x128xf32> to vector<1x32xf32>
    %263 = math.tanh %262 : vector<1x32xf32>
    %264 = arith.mulf %260, %223 : vector<1x32xf32>
    %265 = arith.mulf %259, %263 : vector<1x32xf32>
    %266 = arith.addf %264, %265 : vector<1x32xf32>
    %267 = math.tanh %266 : vector<1x32xf32>
    %268 = arith.mulf %261, %267 : vector<1x32xf32>
    %c6_i32 = arith.constant 6 : i32
    %269 = arith.index_cast %c6_i32 : i32 to index
    %c0_52 = arith.constant 0 : index
    %270 = vector.load %arg1[%269, %c0_52] : memref<8x128xf32, #tpu.memory_space<vmem>>, vector<1x128xf32>
    %271 = arith.truncf %246 : vector<1x32xf32> to vector<1x32xbf16>
    %cst_53 = arith.constant dense<0.000000e+00> : vector<1x128xf32>
    %272 = tpu.matmul %271, %3, %cst_53 {dimension_numbers = #tpu.dot_dimension_numbers<[1], [0], [0], [1], [0, 0, 1, 1], [], []>} : vector<1x32xbf16>, vector<32x128xbf16>, vector<1x128xf32> -> vector<1x128xf32>
    %273 = arith.addf %270, %272 : vector<1x128xf32>
    %274 = vector.extract_strided_slice %273 {offsets = [0, 0], sizes = [1, 96], strides = [1, 1]} : vector<1x128xf32> to vector<1x96xf32>
    %275 = arith.negf %274 : vector<1x96xf32>
    %276 = math.exp %275 : vector<1x96xf32>
    %cst_54 = arith.constant 1.000000e+00 : f32
    %277 = vector.broadcast %cst_54 : f32 to vector<1x96xf32>
    %278 = arith.addf %277, %276 : vector<1x96xf32>
    %279 = arith.divf %277, %278 : vector<1x96xf32>
    %280 = vector.extract_strided_slice %279 {offsets = [0, 0], sizes = [1, 32], strides = [1, 1]} : vector<1x96xf32> to vector<1x32xf32>
    %281 = vector.extract_strided_slice %279 {offsets = [0, 32], sizes = [1, 32], strides = [1, 1]} : vector<1x96xf32> to vector<1x32xf32>
    %282 = vector.extract_strided_slice %279 {offsets = [0, 64], sizes = [1, 32], strides = [1, 1]} : vector<1x96xf32> to vector<1x32xf32>
    %283 = vector.extract_strided_slice %273 {offsets = [0, 96], sizes = [1, 32], strides = [1, 1]} : vector<1x128xf32> to vector<1x32xf32>
    %284 = math.tanh %283 : vector<1x32xf32>
    %285 = arith.mulf %281, %244 : vector<1x32xf32>
    %286 = arith.mulf %280, %284 : vector<1x32xf32>
    %287 = arith.addf %285, %286 : vector<1x32xf32>
    %288 = math.tanh %287 : vector<1x32xf32>
    %289 = arith.mulf %282, %288 : vector<1x32xf32>
    %290 = arith.truncf %289 : vector<1x32xf32> to vector<1x32xbf16>
    %cst_55 = arith.constant dense<0.000000e+00> : vector<1x128xf32>
    %291 = tpu.matmul %290, %4, %cst_55 {dimension_numbers = #tpu.dot_dimension_numbers<[1], [0], [0], [1], [0, 0, 1, 1], [], []>} : vector<1x32xbf16>, vector<32x128xbf16>, vector<1x128xf32> -> vector<1x128xf32>
    %292 = arith.truncf %268 : vector<1x32xf32> to vector<1x32xbf16>
    %cst_56 = arith.constant dense<0.000000e+00> : vector<1x128xf32>
    %293 = tpu.matmul %292, %5, %cst_56 {dimension_numbers = #tpu.dot_dimension_numbers<[1], [0], [0], [1], [0, 0, 1, 1], [], []>} : vector<1x32xbf16>, vector<32x128xbf16>, vector<1x128xf32> -> vector<1x128xf32>
    %294 = arith.addf %291, %293 : vector<1x128xf32>
    %295 = arith.addf %294, %6 : vector<1x128xf32>
    %296 = vector.extract_strided_slice %295 {offsets = [0, 0], sizes = [1, 96], strides = [1, 1]} : vector<1x128xf32> to vector<1x96xf32>
    %297 = arith.negf %296 : vector<1x96xf32>
    %298 = math.exp %297 : vector<1x96xf32>
    %cst_57 = arith.constant 1.000000e+00 : f32
    %299 = vector.broadcast %cst_57 : f32 to vector<1x96xf32>
    %300 = arith.addf %299, %298 : vector<1x96xf32>
    %301 = arith.divf %299, %300 : vector<1x96xf32>
    %302 = vector.extract_strided_slice %301 {offsets = [0, 0], sizes = [1, 32], strides = [1, 1]} : vector<1x96xf32> to vector<1x32xf32>
    %303 = vector.extract_strided_slice %301 {offsets = [0, 32], sizes = [1, 32], strides = [1, 1]} : vector<1x96xf32> to vector<1x32xf32>
    %304 = vector.extract_strided_slice %301 {offsets = [0, 64], sizes = [1, 32], strides = [1, 1]} : vector<1x96xf32> to vector<1x32xf32>
    %305 = vector.extract_strided_slice %295 {offsets = [0, 96], sizes = [1, 32], strides = [1, 1]} : vector<1x128xf32> to vector<1x32xf32>
    %306 = math.tanh %305 : vector<1x32xf32>
    %307 = arith.mulf %303, %266 : vector<1x32xf32>
    %308 = arith.mulf %302, %306 : vector<1x32xf32>
    %309 = arith.addf %307, %308 : vector<1x32xf32>
    %310 = math.tanh %309 : vector<1x32xf32>
    %311 = arith.mulf %304, %310 : vector<1x32xf32>
    %c7_i32 = arith.constant 7 : i32
    %312 = arith.index_cast %c7_i32 : i32 to index
    %c0_58 = arith.constant 0 : index
    %313 = vector.load %arg1[%312, %c0_58] : memref<8x128xf32, #tpu.memory_space<vmem>>, vector<1x128xf32>
    %314 = arith.truncf %289 : vector<1x32xf32> to vector<1x32xbf16>
    %cst_59 = arith.constant dense<0.000000e+00> : vector<1x128xf32>
    %315 = tpu.matmul %314, %3, %cst_59 {dimension_numbers = #tpu.dot_dimension_numbers<[1], [0], [0], [1], [0, 0, 1, 1], [], []>} : vector<1x32xbf16>, vector<32x128xbf16>, vector<1x128xf32> -> vector<1x128xf32>
    %316 = arith.addf %313, %315 : vector<1x128xf32>
    %317 = vector.extract_strided_slice %316 {offsets = [0, 0], sizes = [1, 96], strides = [1, 1]} : vector<1x128xf32> to vector<1x96xf32>
    %318 = arith.negf %317 : vector<1x96xf32>
    %319 = math.exp %318 : vector<1x96xf32>
    %cst_60 = arith.constant 1.000000e+00 : f32
    %320 = vector.broadcast %cst_60 : f32 to vector<1x96xf32>
    %321 = arith.addf %320, %319 : vector<1x96xf32>
    %322 = arith.divf %320, %321 : vector<1x96xf32>
    %323 = vector.extract_strided_slice %322 {offsets = [0, 0], sizes = [1, 32], strides = [1, 1]} : vector<1x96xf32> to vector<1x32xf32>
    %324 = vector.extract_strided_slice %322 {offsets = [0, 32], sizes = [1, 32], strides = [1, 1]} : vector<1x96xf32> to vector<1x32xf32>
    %325 = vector.extract_strided_slice %322 {offsets = [0, 64], sizes = [1, 32], strides = [1, 1]} : vector<1x96xf32> to vector<1x32xf32>
    %326 = vector.extract_strided_slice %316 {offsets = [0, 96], sizes = [1, 32], strides = [1, 1]} : vector<1x128xf32> to vector<1x32xf32>
    %327 = math.tanh %326 : vector<1x32xf32>
    %328 = arith.mulf %324, %287 : vector<1x32xf32>
    %329 = arith.mulf %323, %327 : vector<1x32xf32>
    %330 = arith.addf %328, %329 : vector<1x32xf32>
    %331 = math.tanh %330 : vector<1x32xf32>
    %332 = arith.mulf %325, %331 : vector<1x32xf32>
    %333 = arith.truncf %332 : vector<1x32xf32> to vector<1x32xbf16>
    %cst_61 = arith.constant dense<0.000000e+00> : vector<1x128xf32>
    %334 = tpu.matmul %333, %4, %cst_61 {dimension_numbers = #tpu.dot_dimension_numbers<[1], [0], [0], [1], [0, 0, 1, 1], [], []>} : vector<1x32xbf16>, vector<32x128xbf16>, vector<1x128xf32> -> vector<1x128xf32>
    %335 = arith.truncf %311 : vector<1x32xf32> to vector<1x32xbf16>
    %cst_62 = arith.constant dense<0.000000e+00> : vector<1x128xf32>
    %336 = tpu.matmul %335, %5, %cst_62 {dimension_numbers = #tpu.dot_dimension_numbers<[1], [0], [0], [1], [0, 0, 1, 1], [], []>} : vector<1x32xbf16>, vector<32x128xbf16>, vector<1x128xf32> -> vector<1x128xf32>
    %337 = arith.addf %334, %336 : vector<1x128xf32>
    %338 = arith.addf %337, %6 : vector<1x128xf32>
    %339 = vector.extract_strided_slice %338 {offsets = [0, 0], sizes = [1, 96], strides = [1, 1]} : vector<1x128xf32> to vector<1x96xf32>
    %340 = arith.negf %339 : vector<1x96xf32>
    %341 = math.exp %340 : vector<1x96xf32>
    %cst_63 = arith.constant 1.000000e+00 : f32
    %342 = vector.broadcast %cst_63 : f32 to vector<1x96xf32>
    %343 = arith.addf %342, %341 : vector<1x96xf32>
    %344 = arith.divf %342, %343 : vector<1x96xf32>
    %345 = vector.extract_strided_slice %344 {offsets = [0, 0], sizes = [1, 32], strides = [1, 1]} : vector<1x96xf32> to vector<1x32xf32>
    %346 = vector.extract_strided_slice %344 {offsets = [0, 32], sizes = [1, 32], strides = [1, 1]} : vector<1x96xf32> to vector<1x32xf32>
    %347 = vector.extract_strided_slice %344 {offsets = [0, 64], sizes = [1, 32], strides = [1, 1]} : vector<1x96xf32> to vector<1x32xf32>
    %348 = vector.extract_strided_slice %338 {offsets = [0, 96], sizes = [1, 32], strides = [1, 1]} : vector<1x128xf32> to vector<1x32xf32>
    %349 = math.tanh %348 : vector<1x32xf32>
    %350 = arith.mulf %346, %309 : vector<1x32xf32>
    %351 = arith.mulf %345, %349 : vector<1x32xf32>
    %352 = arith.addf %350, %351 : vector<1x32xf32>
    %353 = math.tanh %352 : vector<1x32xf32>
    %354 = arith.mulf %347, %353 : vector<1x32xf32>
    %c8_i32 = arith.constant 8 : i32
    %c0_64 = arith.constant 0 : index
    %c0_65 = arith.constant 0 : index
    %355 = vector.load %arg8[%c0_64, %c0_65] : memref<1x32xf32, #tpu.memory_space<vmem>>, vector<1x32xf32>
    tpu.vector_store %arg8[%c0_64, %c0_65], %332 {strides = array<i32>} : memref<1x32xf32, #tpu.memory_space<vmem>>, vector<1x32xf32>,
    %c0_66 = arith.constant 0 : index
    %c0_67 = arith.constant 0 : index
    %356 = vector.load %arg9[%c0_66, %c0_67] : memref<1x32xf32, #tpu.memory_space<vmem>>, vector<1x32xf32>
    tpu.vector_store %arg9[%c0_66, %c0_67], %330 {strides = array<i32>} : memref<1x32xf32, #tpu.memory_space<vmem>>, vector<1x32xf32>,
    %c0_68 = arith.constant 0 : index
    %c0_69 = arith.constant 0 : index
    %357 = vector.load %arg10[%c0_68, %c0_69] : memref<1x32xf32, #tpu.memory_space<vmem>>, vector<1x32xf32>
    tpu.vector_store %arg10[%c0_68, %c0_69], %354 {strides = array<i32>} : memref<1x32xf32, #tpu.memory_space<vmem>>, vector<1x32xf32>,
    %c0_70 = arith.constant 0 : index
    %c0_71 = arith.constant 0 : index
    %358 = vector.load %arg11[%c0_70, %c0_71] : memref<1x32xf32, #tpu.memory_space<vmem>>, vector<1x32xf32>
    tpu.vector_store %arg11[%c0_70, %c0_71], %352 {strides = array<i32>} : memref<1x32xf32, #tpu.memory_space<vmem>>, vector<1x32xf32>,
    %c0_i32_72 = arith.constant 0 : i32
    %359 = arith.cmpi eq, %arg0, %c0_i32_72 : i32
    %360 = arith.extui %359 : i1 to i32
    %c0_i32_73 = arith.constant 0 : i32
    %361 = arith.cmpi ne, %360, %c0_i32_73 : i32
    scf.if %361 {
      %c0_74 = arith.constant 0 : index
      %c0_75 = arith.constant 0 : index
      %362 = vector.load %arg6[%c0_74, %c0_75] : memref<2x32xf32, #tpu.memory_space<vmem>>, vector<1x32xf32>
      tpu.vector_store %arg6[%c0_74, %c0_75], %332 {strides = array<i32>} : memref<2x32xf32, #tpu.memory_space<vmem>>, vector<1x32xf32>,
      %c1 = arith.constant 1 : index
      %c0_76 = arith.constant 0 : index
      %363 = vector.load %arg6[%c1, %c0_76] : memref<2x32xf32, #tpu.memory_space<vmem>>, vector<1x32xf32>
      tpu.vector_store %arg6[%c1, %c0_76], %354 {strides = array<i32>} : memref<2x32xf32, #tpu.memory_space<vmem>>, vector<1x32xf32>,
      %c0_77 = arith.constant 0 : index
      %c0_78 = arith.constant 0 : index
      %364 = vector.load %arg7[%c0_77, %c0_78] : memref<2x32xf32, #tpu.memory_space<vmem>>, vector<1x32xf32>
      tpu.vector_store %arg7[%c0_77, %c0_78], %330 {strides = array<i32>} : memref<2x32xf32, #tpu.memory_space<vmem>>, vector<1x32xf32>,
      %c1_79 = arith.constant 1 : index
      %c0_80 = arith.constant 0 : index
      %365 = vector.load %arg7[%c1_79, %c0_80] : memref<2x32xf32, #tpu.memory_space<vmem>>, vector<1x32xf32>
      tpu.vector_store %arg7[%c1_79, %c0_80], %352 {strides = array<i32>} : memref<2x32xf32, #tpu.memory_space<vmem>>, vector<1x32xf32>,
    } else {
    }
    return
  }
  func.func @transform_0(%arg0: i32) -> (i32, i32) {
    %c0_i32 = arith.constant 0 : i32
    %c0_i32_0 = arith.constant 0 : i32
    return %arg0, %c0_i32 : i32, i32
  }
  func.func @transform_1(%arg0: i32) -> (i32, i32) {
    %c0_i32 = arith.constant 0 : i32
    %c0_i32_0 = arith.constant 0 : i32
    %c0_i32_1 = arith.constant 0 : i32
    return %c0_i32, %c0_i32_0 : i32, i32
  }
  func.func @transform_2(%arg0: i32) -> (i32, i32) {
    %c0_i32 = arith.constant 0 : i32
    %c0_i32_0 = arith.constant 0 : i32
    %c0_i32_1 = arith.constant 0 : i32
    return %c0_i32, %c0_i32_0 : i32, i32
  }
  func.func @transform_3(%arg0: i32) -> (i32, i32) {
    %c0_i32 = arith.constant 0 : i32
    %c0_i32_0 = arith.constant 0 : i32
    %c0_i32_1 = arith.constant 0 : i32
    return %c0_i32, %c0_i32_0 : i32, i32
  }
  func.func @transform_4(%arg0: i32) -> (i32, i32) {
    %c0_i32 = arith.constant 0 : i32
    %c0_i32_0 = arith.constant 0 : i32
    %c0_i32_1 = arith.constant 0 : i32
    return %c0_i32, %c0_i32_0 : i32, i32
  }
  func.func @transform_5(%arg0: i32) -> (i32, i32) {
    %c0_i32 = arith.constant 0 : i32
    %c0_i32_0 = arith.constant 0 : i32
    %c0_i32_1 = arith.constant 0 : i32
    return %c0_i32, %c0_i32_0 : i32, i32
  }
  func.func @transform_6(%arg0: i32) -> (i32, i32) {
    %c0_i32 = arith.constant 0 : i32
    %c0_i32_0 = arith.constant 0 : i32
    %c0_i32_1 = arith.constant 0 : i32
    return %c0_i32, %c0_i32_0 : i32, i32
  }
}

</mosaic_0001>

<llo_original>
// kernel: elstm_forward.1
$region0: #{elstm_forward.1}
  #allocation0 [shape = 'u32[]', space=smem, size = 0x4, offset = 0x4, fixed_abs, tag = 'smem constant byte address 0x4 - core index']
  #allocation1 [shape = 'u32[144,128]{1,0:T(1,128)}', space=vmem, size = 0x12000, scoped, tag = 'internal scratch']
  #allocation2 [shape = 'f32[1,32]{1,0:T(1,128)}', space=vmem, size = 0x200, scoped, tag = 'scratch operand']
  #allocation3 [shape = 'f32[1,32]{1,0:T(1,128)}', space=vmem, size = 0x200, scoped, tag = 'scratch operand']
  #allocation4 [shape = 'f32[1,32]{1,0:T(1,128)}', space=vmem, size = 0x200, scoped, tag = 'scratch operand']
  #allocation5 [shape = 'f32[1,32]{1,0:T(1,128)}', space=vmem, size = 0x200, scoped, tag = 'scratch operand']
  %s0 = inlined_call_operand.vmem [shape: f32[8,128], index: 0, kind: input, shape index: {}]
  %s1 = inlined_call_operand.vmem [shape: bf16[32,128], index: 1, kind: input, shape index: {}]
  %s2 = inlined_call_operand.vmem [shape: bf16[32,128], index: 2, kind: input, shape index: {}]
  %s3 = inlined_call_operand.vmem [shape: bf16[32,128], index: 3, kind: input, shape index: {}]
  %s4 = inlined_call_operand.vmem [shape: f32[1,128], index: 4, kind: input, shape index: {}]
  %s5 = inlined_call_operand.hbm [shape: f32[2,32], index: 5, kind: output, shape index: {0}]
  %s6 = inlined_call_operand.hbm [shape: f32[2,32], index: 6, kind: output, shape index: {1}]
  %7 = xla_tuple %s5, %s6
  %s8 = sld [smem:[#allocation0]]
  $region46: #{elstm_forward.1} parent=0
    _
  %s10 = ssub.s32 1, %s8
  %s11 = scalar_select 0, %s10, %s8
  $region1: #{elstm_forward.1} parent=0
    #allocation6 [shape = 'u8[1024]{0}', space=vmem, size = 0x400, scoped, tag = 'output window, operand 0, single buffered']
    #allocation7 [shape = 's32[1]{0}', space=sflag, size = 0x4, scoped, tag = 'scoped memory for elstm_forward.1']
    #allocation8 [shape = 'u8[1024]{0}', space=vmem, size = 0x400, scoped, tag = 'output window, operand 1, single buffered']
    #allocation9 [shape = 's32[1]{0}', space=sflag, size = 0x4, scoped, tag = 'scoped memory for elstm_forward.1']
    %12 = vsyncpa [#allocation7], 0
    %13 = vsyncpa [#allocation9], 0
    // Predicated region
    $region2: #{elstm_forward.1} parent=1 // pred_check
      _
    $region3: #{elstm_forward.1} parent=1 // pred_check_branch
      %15 = sbr.rel (0) target = $region5
    $region4: #{elstm_forward.1} parent=1 // pred_region
      _
    $region5: #{elstm_forward.1} parent=1 // pred_fallthru
      _
    // Predicated region
    $region6: #{elstm_forward.1} parent=1 // pred_check
      _
    $region7: #{elstm_forward.1} parent=1 // pred_check_branch
      %17 = sbr.rel (0) target = $region9
    $region8: #{elstm_forward.1} parent=1 // pred_region
      _
    $region9: #{elstm_forward.1} parent=1 // pred_fallthru
      _
    // Predicated region
    $region10: #{elstm_forward.1} parent=1 // pred_check
      _
    $region11: #{elstm_forward.1} parent=1 // pred_check_branch
      %19 = sbr.rel (0) target = $region13
    $region12: #{elstm_forward.1} parent=1 // pred_region
      _
    $region13: #{elstm_forward.1} parent=1 // pred_fallthru
      _
    // Predicated region
    $region14: #{elstm_forward.1} parent=1 // pred_check
      _
    $region15: #{elstm_forward.1} parent=1 // pred_check_branch
      %21 = sbr.rel (0) target = $region17
    $region16: #{elstm_forward.1} parent=1 // pred_region
      _
    $region17: #{elstm_forward.1} parent=1 // pred_fallthru
      _
    // Predicated region
    $region18: #{elstm_forward.1} parent=1 // pred_check
      _
    $region19: #{elstm_forward.1} parent=1 // pred_check_branch
      %23 = sbr.rel (0) target = $region21
    $region20: #{elstm_forward.1} parent=1 // pred_region
      _
    $region21: #{elstm_forward.1} parent=1 // pred_fallthru
      _
    %p25 = scmp.eq.s32.totalorder 0, 0
    // Predicated region
    $region22: #{elstm_forward.1} parent=1 // pred_check
      %p26 = pneg %p25
    $region23: #{elstm_forward.1} parent=1 // pred_check_branch
      %28 = sbr.rel (%p26) target = $region25
    $region24: #{elstm_forward.1} parent=1 // pred_region
      %vm29 = vcmask 253952
      %30 = vst.msk [vmem:[#allocation2] sm:$0x1] %vm29, 0.0
      %31 = vst.msk [vmem:[#allocation3] sm:$0x1] %vm29, 0.0
      %32 = vst.msk [vmem:[#allocation4] sm:$0x1] %vm29, 0.0
      %33 = vst.msk [vmem:[#allocation5] sm:$0x1] %vm29, 0.0
    $region25: #{elstm_forward.1} parent=1 // pred_fallthru
      _
    %v34 = vld [vmem:[%s1] sm:$0xf]
    %v35 = vld [vmem:[%s1 + $0x4] sm:$0xf]
    %v36 = vld [vmem:[%s1 + $0x8] sm:$0xf]
    %v37 = vld [vmem:[%s1 + $0xc] sm:$0xf]
    %v38 = vld [vmem:[%s2] sm:$0xf]
    %v39 = vld [vmem:[%s2 + $0x4] sm:$0xf]
    %v40 = vld [vmem:[%s2 + $0x8] sm:$0xf]
    %v41 = vld [vmem:[%s2 + $0xc] sm:$0xf]
    %v42 = vld [vmem:[%s3] sm:$0xf]
    %v43 = vld [vmem:[%s3 + $0x4] sm:$0xf]
    %v44 = vld [vmem:[%s3 + $0x8] sm:$0xf]
    %v45 = vld [vmem:[%s3 + $0xc] sm:$0xf]
    %v46 = vld [vmem:[%s4] sm:$0x1]
    %v47 = vld [vmem:[#allocation2] sm:$0x1]
    %v48 = vld [vmem:[#allocation3] sm:$0x1]
    %v49 = vld [vmem:[#allocation4] sm:$0x1]
    %v50 = vld [vmem:[#allocation5] sm:$0x1]
    %v51 = vld [vmem:[%s0] sm:$0x1]
    %v52 = vpack.c.bf16 %v47, %v47
    %v57 = vunpack.c.l.b16 %v34
    %v58 = vunpack.c.l.b16 %v35
    %v59 = vunpack.c.l.b16 %v36
    %v60 = vunpack.c.l.b16 %v37
    %v61 = vpack.c.b16 %v58, %v57
    %v62 = vpack.c.b16 %v60, %v59
    %vm65 = vcmask 261120
    %v67 = vsel %vm65, %v52, 0
    %69 = vmatprep.subr.bf16.mxu0 0
    %70 = vmatpush1.bf16.msra.mxu0 %v61
    %71 = vmatprep.subr.bf16.mxu0 0
    %72 = vmatpush1.bf16.msra.mxu0 %v62
    %73 = vmatprep.subr.bf16.mxu0 0
    %74 = vmatpush1.bf16.msra.mxu0 0
    %75 = vmatprep.subr.bf16.mxu0 0
    %76 = vmatpush1.bf16.msra.mxu0 0
    %77 = vmatprep.subr.bf16.mxu0 0
    %78 = vmatpush1.bf16.msra.mxu0 0
    %79 = vmatprep.subr.bf16.mxu0 0
    %80 = vmatpush1.bf16.msra.mxu0 0
    %81 = vmatprep.subr.bf16.mxu0 0
    %82 = vmatpush1.bf16.msra.mxu0 0
    %83 = vmatprep.subr.bf16.mxu0 0
    %84 = vmatpush1.bf16.msra.mxu0 0
    %85 = vmatprep.subr.bf16.mxu0 0
    %86 = vmatpush1.bf16.msra.mxu0 0
    %87 = vmatprep.subr.bf16.mxu0 0
    %88 = vmatpush1.bf16.msra.mxu0 0
    %89 = vmatprep.subr.bf16.mxu0 0
    %90 = vmatpush1.bf16.msra.mxu0 0
    %91 = vmatprep.subr.bf16.mxu0 0
    %92 = vmatpush1.bf16.msra.mxu0 0
    %93 = vmatprep.subr.bf16.mxu0 0
    %94 = vmatpush1.bf16.msra.mxu0 0
    %95 = vmatprep.subr.bf16.mxu0 0
    %96 = vmatpush1.bf16.msra.mxu0 0
    %97 = vmatprep.subr.bf16.mxu0 0
    %98 = vmatpush1.bf16.msra.mxu0 0
    %99 = vmatprep.subr.bf16.mxu0 0
    %100 = vmatpush1.bf16.msra.mxu0 0
    %101 = vmatprep.mubr.bf16.mxu0 0
    %102 = vmatmul.mubr.bf16.gmra.mrb[0].mxu0 %v67
    %v103 = vpop.f32.mrb[0].mxu0
    %v104 = vadd.f32 0.0, %v103
    %v105 = vpop.f32.mrb[0].mxu0
    %v106 = vpop.f32.mrb[0].mxu0
    %v107 = vpop.f32.mrb[0].mxu0
    %108 = vdwg.mxu0
    %v109 = vadd.f32 %v51, %v104
    %v110 = vxor.u32 %v109, 2147483648
    %v111 = vmul.f32 %v110, 1.442695
    %v112 = vpow.pop %v111
    %v113 = vadd.f32 %v112, 1.0
    %v114 = vrcp.pop %v113
    %v115 = vmul.f32 1.0, %v114
    %v116 = vtanh.pop %v109
    %v118 = vlaneseq
    %v119 = vshrl.u32 %v118, 7
    %v120 = vsub.s32 0, %v119
    %v121 = vrot.slane %v48, %v120
    %122 = vrot.lane.b32.xlu0 %v121, 32
    %v123 = vpop.permute.xlu0 %122
    %v125 = vmul.f32 %v115, %v123
    %127 = vrot.lane.b32.xlu0 %v116, 32
    %v128 = vpop.permute.xlu0 %127
    %v130 = vmul.f32 %v115, %v128
    %132 = vrot.lane.b32.xlu0 %v130, 32
    %v133 = vpop.permute.xlu0 %132
    %v135 = vadd.f32 %v125, %v133
    %v136 = vtanh.pop %v135
    %138 = vrot.lane.b32.xlu0 %v136, 32
    %v139 = vpop.permute.xlu0 %138
    %v141 = vmul.f32 %v115, %v139
    %v142 = vpack.c.bf16 %v141, %v141
    %v143 = vpack.c.bf16 %v49, %v49
    %v148 = vunpack.c.l.b16 %v42
    %v149 = vunpack.c.l.b16 %v43
    %v150 = vunpack.c.l.b16 %v44
    %v151 = vunpack.c.l.b16 %v45
    %v152 = vpack.c.b16 %v149, %v148
    %v153 = vpack.c.b16 %v151, %v150
    %v157 = vsel %vm65, %v143, 0
    %159 = vmatprep.subr.bf16.mxu0 0
    %160 = vmatpush1.bf16.msra.mxu0 %v152
    %161 = vmatprep.subr.bf16.mxu0 0
    %162 = vmatpush1.bf16.msra.mxu0 %v153
    %163 = vmatprep.subr.bf16.mxu0 0
    %164 = vmatpush1.bf16.msra.mxu0 0
    %165 = vmatprep.subr.bf16.mxu0 0
    %166 = vmatpush1.bf16.msra.mxu0 0
    %167 = vmatprep.subr.bf16.mxu0 0
    %168 = vmatpush1.bf16.msra.mxu0 0
    %169 = vmatprep.subr.bf16.mxu0 0
    %170 = vmatpush1.bf16.msra.mxu0 0
    %171 = vmatprep.subr.bf16.mxu0 0
    %172 = vmatpush1.bf16.msra.mxu0 0
    %173 = vmatprep.subr.bf16.mxu0 0
    %174 = vmatpush1.bf16.msra.mxu0 0
    %175 = vmatprep.subr.bf16.mxu0 0
    %176 = vmatpush1.bf16.msra.mxu0 0
    %177 = vmatprep.subr.bf16.mxu0 0
    %178 = vmatpush1.bf16.msra.mxu0 0
    %179 = vmatprep.subr.bf16.mxu0 0
    %180 = vmatpush1.bf16.msra.mxu0 0
    %181 = vmatprep.subr.bf16.mxu0 0
    %182 = vmatpush1.bf16.msra.mxu0 0
    %183 = vmatprep.subr.bf16.mxu0 0
    %184 = vmatpush1.bf16.msra.mxu0 0
    %185 = vmatprep.subr.bf16.mxu0 0
    %186 = vmatpush1.bf16.msra.mxu0 0
    %187 = vmatprep.subr.bf16.mxu0 0
    %188 = vmatpush1.bf16.msra.mxu0 0
    %189 = vmatprep.subr.bf16.mxu0 0
    %190 = vmatpush1.bf16.msra.mxu0 0
    %191 = vmatprep.mubr.bf16.mxu0 0
    %192 = vmatmul.mubr.bf16.gmra.mrb[0].mxu0 %v157
    %v193 = vpop.f32.mrb[0].mxu0
    %v194 = vadd.f32 0.0, %v193
    %v195 = vpop.f32.mrb[0].mxu0
    %v196 = vpop.f32.mrb[0].mxu0
    %v197 = vpop.f32.mrb[0].mxu0
    %198 = vdwg.mxu0
    %200 = vrot.lane.b32.xlu0 %v142, 64
    %v201 = vpop.permute.xlu0 %200
    %v206 = vunpack.c.l.b16 %v38
    %v207 = vunpack.c.l.b16 %v39
    %v208 = vunpack.c.l.b16 %v40
    %v209 = vunpack.c.l.b16 %v41
    %v210 = vpack.c.b16 %v207, %v206
    %v211 = vpack.c.b16 %v209, %v208
    %v215 = vsel %vm65, %v201, 0
    %217 = vmatprep.subr.bf16.mxu0 0
    %218 = vmatpush1.bf16.msra.mxu0 %v210
    %219 = vmatprep.subr.bf16.mxu0 0
    %220 = vmatpush1.bf16.msra.mxu0 %v211
    %221 = vmatprep.subr.bf16.mxu0 0
    %222 = vmatpush1.bf16.msra.mxu0 0
    %223 = vmatprep.subr.bf16.mxu0 0
    %224 = vmatpush1.bf16.msra.mxu0 0
    %225 = vmatprep.subr.bf16.mxu0 0
    %226 = vmatpush1.bf16.msra.mxu0 0
    %227 = vmatprep.subr.bf16.mxu0 0
    %228 = vmatpush1.bf16.msra.mxu0 0
    %229 = vmatprep.subr.bf16.mxu0 0
    %230 = vmatpush1.bf16.msra.mxu0 0
    %231 = vmatprep.subr.bf16.mxu0 0
    %232 = vmatpush1.bf16.msra.mxu0 0
    %233 = vmatprep.subr.bf16.mxu0 0
    %234 = vmatpush1.bf16.msra.mxu0 0
    %235 = vmatprep.subr.bf16.mxu0 0
    %236 = vmatpush1.bf16.msra.mxu0 0
    %237 = vmatprep.subr.bf16.mxu0 0
    %238 = vmatpush1.bf16.msra.mxu0 0
    %239 = vmatprep.subr.bf16.mxu0 0
    %240 = vmatpush1.bf16.msra.mxu0 0
    %241 = vmatprep.subr.bf16.mxu0 0
    %242 = vmatpush1.bf16.msra.mxu0 0
    %243 = vmatprep.subr.bf16.mxu0 0
    %244 = vmatpush1.bf16.msra.mxu0 0
    %245 = vmatprep.subr.bf16.mxu0 0
    %246 = vmatpush1.bf16.msra.mxu0 0
    %247 = vmatprep.subr.bf16.mxu0 0
    %248 = vmatpush1.bf16.msra.mxu0 0
    %249 = vmatprep.mubr.bf16.mxu0 0
    %250 = vmatmul.mubr.bf16.gmra.mrb[0].mxu0 %v215
    %v251 = vpop.f32.mrb[0].mxu0
    %v252 = vadd.f32 %v194, %v251
    %v253 = vpop.f32.mrb[0].mxu0
    %v254 = vpop.f32.mrb[0].mxu0
    %v255 = vpop.f32.mrb[0].mxu0
    %256 = vdwg.mxu0
    %v257 = vadd.f32 %v252, %v46
    %v258 = vxor.u32 %v257, 2147483648
    %v259 = vmul.f32 %v258, 1.442695
    %v260 = vpow.pop %v259
    %v261 = vadd.f32 %v260, 1.0
    %v262 = vrcp.pop %v261
    %v263 = vmul.f32 1.0, %v262
    %v264 = vtanh.pop %v257
    %v266 = vlaneseq
    %v267 = vshrl.u32 %v266, 7
    %v268 = vsub.s32 0, %v267
    %v269 = vrot.slane %v50, %v268
    %270 = vrot.lane.b32.xlu0 %v269, 32
    %v271 = vpop.permute.xlu0 %270
    %v273 = vmul.f32 %v263, %v271
    %275 = vrot.lane.b32.xlu0 %v264, 32
    %v276 = vpop.permute.xlu0 %275
    %v278 = vmul.f32 %v263, %v276
    %280 = vrot.lane.b32.xlu0 %v278, 32
    %v281 = vpop.permute.xlu0 %280
    %v283 = vadd.f32 %v273, %v281
    %v284 = vtanh.pop %v283
    %286 = vrot.lane.b32.xlu0 %v284, 32
    %v287 = vpop.permute.xlu0 %286
    %v289 = vmul.f32 %v263, %v287
    %v290 = vld [vmem:[%s0 + $0x1] sm:$0x1]
    %291 = vmatprep.subr.bf16.mxu0 0
    %292 = vmatpush1.bf16.msra.mxu0 %v61
    %293 = vmatprep.subr.bf16.mxu0 0
    %294 = vmatpush1.bf16.msra.mxu0 %v62
    %295 = vmatprep.subr.bf16.mxu0 0
    %296 = vmatpush1.bf16.msra.mxu0 0
    %297 = vmatprep.subr.bf16.mxu0 0
    %298 = vmatpush1.bf16.msra.mxu0 0
    %299 = vmatprep.subr.bf16.mxu0 0
    %300 = vmatpush1.bf16.msra.mxu0 0
    %301 = vmatprep.subr.bf16.mxu0 0
    %302 = vmatpush1.bf16.msra.mxu0 0
    %303 = vmatprep.subr.bf16.mxu0 0
    %304 = vmatpush1.bf16.msra.mxu0 0
    %305 = vmatprep.subr.bf16.mxu0 0
    %306 = vmatpush1.bf16.msra.mxu0 0
    %307 = vmatprep.subr.bf16.mxu0 0
    %308 = vmatpush1.bf16.msra.mxu0 0
    %309 = vmatprep.subr.bf16.mxu0 0
    %310 = vmatpush1.bf16.msra.mxu0 0
    %311 = vmatprep.subr.bf16.mxu0 0
    %312 = vmatpush1.bf16.msra.mxu0 0
    %313 = vmatprep.subr.bf16.mxu0 0
    %314 = vmatpush1.bf16.msra.mxu0 0
    %315 = vmatprep.subr.bf16.mxu0 0
    %316 = vmatpush1.bf16.msra.mxu0 0
    %317 = vmatprep.subr.bf16.mxu0 0
    %318 = vmatpush1.bf16.msra.mxu0 0
    %319 = vmatprep.subr.bf16.mxu0 0
    %320 = vmatpush1.bf16.msra.mxu0 0
    %321 = vmatprep.subr.bf16.mxu0 0
    %322 = vmatpush1.bf16.msra.mxu0 0
    %323 = vmatprep.mubr.bf16.mxu0 0
    %324 = vmatmul.mubr.bf16.gmra.mrb[0].mxu0 %v215
    %v325 = vpop.f32.mrb[0].mxu0
    %v326 = vadd.f32 0.0, %v325
    %v327 = vpop.f32.mrb[0].mxu0
    %v328 = vpop.f32.mrb[0].mxu0
    %v329 = vpop.f32.mrb[0].mxu0
    %330 = vdwg.mxu0
    %v331 = vadd.f32 %v290, %v326
    %v332 = vxor.u32 %v331, 2147483648
    %v333 = vmul.f32 %v332, 1.442695
    %v334 = vpow.pop %v333
    %v335 = vadd.f32 %v334, 1.0
    %v336 = vrcp.pop %v335
    %v337 = vmul.f32 1.0, %v336
    %v338 = vtanh.pop %v331
    %v339 = vmul.f32 %v337, %v135
    %341 = vrot.lane.b32.xlu0 %v338, 32
    %v342 = vpop.permute.xlu0 %341
    %v344 = vmul.f32 %v337, %v342
    %346 = vrot.lane.b32.xlu0 %v344, 32
    %v347 = vpop.permute.xlu0 %346
    %v349 = vadd.f32 %v339, %v347
    %v350 = vtanh.pop %v349
    %352 = vrot.lane.b32.xlu0 %v350, 32
    %v353 = vpop.permute.xlu0 %352
    %v355 = vmul.f32 %v337, %v353
    %v356 = vpack.c.bf16 %v355, %v355
    %v357 = vpack.c.bf16 %v289, %v289
    %359 = vrot.lane.b32.xlu0 %v357, 64
    %v360 = vpop.permute.xlu0 %359
    %v362 = vsel %vm65, %v360, 0
    %364 = vmatprep.subr.bf16.mxu0 0
    %365 = vmatpush1.bf16.msra.mxu0 %v152
    %366 = vmatprep.subr.bf16.mxu0 0
    %367 = vmatpush1.bf16.msra.mxu0 %v153
    %368 = vmatprep.subr.bf16.mxu0 0
    %369 = vmatpush1.bf16.msra.mxu0 0
    %370 = vmatprep.subr.bf16.mxu0 0
    %371 = vmatpush1.bf16.msra.mxu0 0
    %372 = vmatprep.subr.bf16.mxu0 0
    %373 = vmatpush1.bf16.msra.mxu0 0
    %374 = vmatprep.subr.bf16.mxu0 0
    %375 = vmatpush1.bf16.msra.mxu0 0
    %376 = vmatprep.subr.bf16.mxu0 0
    %377 = vmatpush1.bf16.msra.mxu0 0
    %378 = vmatprep.subr.bf16.mxu0 0
    %379 = vmatpush1.bf16.msra.mxu0 0
    %380 = vmatprep.subr.bf16.mxu0 0
    %381 = vmatpush1.bf16.msra.mxu0 0
    %382 = vmatprep.subr.bf16.mxu0 0
    %383 = vmatpush1.bf16.msra.mxu0 0
    %384 = vmatprep.subr.bf16.mxu0 0
    %385 = vmatpush1.bf16.msra.mxu0 0
    %386 = vmatprep.subr.bf16.mxu0 0
    %387 = vmatpush1.bf16.msra.mxu0 0
    %388 = vmatprep.subr.bf16.mxu0 0
    %389 = vmatpush1.bf16.msra.mxu0 0
    %390 = vmatprep.subr.bf16.mxu0 0
    %391 = vmatpush1.bf16.msra.mxu0 0
    %392 = vmatprep.subr.bf16.mxu0 0
    %393 = vmatpush1.bf16.msra.mxu0 0
    %394 = vmatprep.subr.bf16.mxu0 0
    %395 = vmatpush1.bf16.msra.mxu0 0
    %396 = vmatprep.mubr.bf16.mxu0 0
    %397 = vmatmul.mubr.bf16.gmra.mrb[0].mxu0 %v362
    %v398 = vpop.f32.mrb[0].mxu0
    %v399 = vadd.f32 0.0, %v398
    %v400 = vpop.f32.mrb[0].mxu0
    %v401 = vpop.f32.mrb[0].mxu0
    %v402 = vpop.f32.mrb[0].mxu0
    %403 = vdwg.mxu0
    %405 = vrot.lane.b32.xlu0 %v356, 64
    %v406 = vpop.permute.xlu0 %405
    %v408 = vsel %vm65, %v406, 0
    %410 = vmatprep.subr.bf16.mxu0 0
    %411 = vmatpush1.bf16.msra.mxu0 %v210
    %412 = vmatprep.subr.bf16.mxu0 0
    %413 = vmatpush1.bf16.msra.mxu0 %v211
    %414 = vmatprep.subr.bf16.mxu0 0
    %415 = vmatpush1.bf16.msra.mxu0 0
    %416 = vmatprep.subr.bf16.mxu0 0
    %417 = vmatpush1.bf16.msra.mxu0 0
    %418 = vmatprep.subr.bf16.mxu0 0
    %419 = vmatpush1.bf16.msra.mxu0 0
    %420 = vmatprep.subr.bf16.mxu0 0
    %421 = vmatpush1.bf16.msra.mxu0 0
    %422 = vmatprep.subr.bf16.mxu0 0
    %423 = vmatpush1.bf16.msra.mxu0 0
    %424 = vmatprep.subr.bf16.mxu0 0
    %425 = vmatpush1.bf16.msra.mxu0 0
    %426 = vmatprep.subr.bf16.mxu0 0
    %427 = vmatpush1.bf16.msra.mxu0 0
    %428 = vmatprep.subr.bf16.mxu0 0
    %429 = vmatpush1.bf16.msra.mxu0 0
    %430 = vmatprep.subr.bf16.mxu0 0
    %431 = vmatpush1.bf16.msra.mxu0 0
    %432 = vmatprep.subr.bf16.mxu0 0
    %433 = vmatpush1.bf16.msra.mxu0 0
    %434 = vmatprep.subr.bf16.mxu0 0
    %435 = vmatpush1.bf16.msra.mxu0 0
    %436 = vmatprep.subr.bf16.mxu0 0
    %437 = vmatpush1.bf16.msra.mxu0 0
    %438 = vmatprep.subr.bf16.mxu0 0
    %439 = vmatpush1.bf16.msra.mxu0 0
    %440 = vmatprep.subr.bf16.mxu0 0
    %441 = vmatpush1.bf16.msra.mxu0 0
    %442 = vmatprep.mubr.bf16.mxu0 0
    %443 = vmatmul.mubr.bf16.gmra.mrb[0].mxu0 %v408
    %v444 = vpop.f32.mrb[0].mxu0
    %v445 = vadd.f32 %v399, %v444
    %v446 = vpop.f32.mrb[0].mxu0
    %v447 = vpop.f32.mrb[0].mxu0
    %v448 = vpop.f32.mrb[0].mxu0
    %449 = vdwg.mxu0
    %v450 = vadd.f32 %v445, %v46
    %v451 = vxor.u32 %v450, 2147483648
    %v452 = vmul.f32 %v451, 1.442695
    %v453 = vpow.pop %v452
    %v454 = vadd.f32 %v453, 1.0
    %v455 = vrcp.pop %v454
    %v456 = vmul.f32 1.0, %v455
    %v457 = vtanh.pop %v450
    %v458 = vmul.f32 %v456, %v283
    %460 = vrot.lane.b32.xlu0 %v457, 32
    %v461 = vpop.permute.xlu0 %460
    %v463 = vmul.f32 %v456, %v461
    %465 = vrot.lane.b32.xlu0 %v463, 32
    %v466 = vpop.permute.xlu0 %465
    %v468 = vadd.f32 %v458, %v466
    %v469 = vtanh.pop %v468
    %471 = vrot.lane.b32.xlu0 %v469, 32
    %v472 = vpop.permute.xlu0 %471
    %v474 = vmul.f32 %v456, %v472
    %v475 = vld [vmem:[%s0 + $0x2] sm:$0x1]
    %476 = vmatprep.subr.bf16.mxu0 0
    %477 = vmatpush1.bf16.msra.mxu0 %v61
    %478 = vmatprep.subr.bf16.mxu0 0
    %479 = vmatpush1.bf16.msra.mxu0 %v62
    %480 = vmatprep.subr.bf16.mxu0 0
    %481 = vmatpush1.bf16.msra.mxu0 0
    %482 = vmatprep.subr.bf16.mxu0 0
    %483 = vmatpush1.bf16.msra.mxu0 0
    %484 = vmatprep.subr.bf16.mxu0 0
    %485 = vmatpush1.bf16.msra.mxu0 0
    %486 = vmatprep.subr.bf16.mxu0 0
    %487 = vmatpush1.bf16.msra.mxu0 0
    %488 = vmatprep.subr.bf16.mxu0 0
    %489 = vmatpush1.bf16.msra.mxu0 0
    %490 = vmatprep.subr.bf16.mxu0 0
    %491 = vmatpush1.bf16.msra.mxu0 0
    %492 = vmatprep.subr.bf16.mxu0 0
    %493 = vmatpush1.bf16.msra.mxu0 0
    %494 = vmatprep.subr.bf16.mxu0 0
    %495 = vmatpush1.bf16.msra.mxu0 0
    %496 = vmatprep.subr.bf16.mxu0 0
    %497 = vmatpush1.bf16.msra.mxu0 0
    %498 = vmatprep.subr.bf16.mxu0 0
    %499 = vmatpush1.bf16.msra.mxu0 0
    %500 = vmatprep.subr.bf16.mxu0 0
    %501 = vmatpush1.bf16.msra.mxu0 0
    %502 = vmatprep.subr.bf16.mxu0 0
    %503 = vmatpush1.bf16.msra.mxu0 0
    %504 = vmatprep.subr.bf16.mxu0 0
    %505 = vmatpush1.bf16.msra.mxu0 0
    %506 = vmatprep.subr.bf16.mxu0 0
    %507 = vmatpush1.bf16.msra.mxu0 0
    %508 = vmatprep.mubr.bf16.mxu0 0
    %509 = vmatmul.mubr.bf16.gmra.mrb[0].mxu0 %v408
    %v510 = vpop.f32.mrb[0].mxu0
    %v511 = vadd.f32 0.0, %v510
    %v512 = vpop.f32.mrb[0].mxu0
    %v513 = vpop.f32.mrb[0].mxu0
    %v514 = vpop.f32.mrb[0].mxu0
    %515 = vdwg.mxu0
    %v516 = vadd.f32 %v475, %v511
    %v517 = vxor.u32 %v516, 2147483648
    %v518 = vmul.f32 %v517, 1.442695
    %v519 = vpow.pop %v518
    %v520 = vadd.f32 %v519, 1.0
    %v521 = vrcp.pop %v520
    %v522 = vmul.f32 1.0, %v521
    %v523 = vtanh.pop %v516
    %v524 = vmul.f32 %v522, %v349
    %526 = vrot.lane.b32.xlu0 %v523, 32
    %v527 = vpop.permute.xlu0 %526
    %v529 = vmul.f32 %v522, %v527
    %531 = vrot.lane.b32.xlu0 %v529, 32
    %v532 = vpop.permute.xlu0 %531
    %v534 = vadd.f32 %v524, %v532
    %v535 = vtanh.pop %v534
    %537 = vrot.lane.b32.xlu0 %v535, 32
    %v538 = vpop.permute.xlu0 %537
    %v540 = vmul.f32 %v522, %v538
    %v541 = vpack.c.bf16 %v540, %v540
    %v542 = vpack.c.bf16 %v474, %v474
    %544 = vrot.lane.b32.xlu0 %v542, 64
    %v545 = vpop.permute.xlu0 %544
    %v547 = vsel %vm65, %v545, 0
    %549 = vmatprep.subr.bf16.mxu0 0
    %550 = vmatpush1.bf16.msra.mxu0 %v152
    %551 = vmatprep.subr.bf16.mxu0 0
    %552 = vmatpush1.bf16.msra.mxu0 %v153
    %553 = vmatprep.subr.bf16.mxu0 0
    %554 = vmatpush1.bf16.msra.mxu0 0
    %555 = vmatprep.subr.bf16.mxu0 0
    %556 = vmatpush1.bf16.msra.mxu0 0
    %557 = vmatprep.subr.bf16.mxu0 0
    %558 = vmatpush1.bf16.msra.mxu0 0
    %559 = vmatprep.subr.bf16.mxu0 0
    %560 = vmatpush1.bf16.msra.mxu0 0
    %561 = vmatprep.subr.bf16.mxu0 0
    %562 = vmatpush1.bf16.msra.mxu0 0
    %563 = vmatprep.subr.bf16.mxu0 0
    %564 = vmatpush1.bf16.msra.mxu0 0
    %565 = vmatprep.subr.bf16.mxu0 0
    %566 = vmatpush1.bf16.msra.mxu0 0
    %567 = vmatprep.subr.bf16.mxu0 0
    %568 = vmatpush1.bf16.msra.mxu0 0
    %569 = vmatprep.subr.bf16.mxu0 0
    %570 = vmatpush1.bf16.msra.mxu0 0
    %571 = vmatprep.subr.bf16.mxu0 0
    %572 = vmatpush1.bf16.msra.mxu0 0
    %573 = vmatprep.subr.bf16.mxu0 0
    %574 = vmatpush1.bf16.msra.mxu0 0
    %575 = vmatprep.subr.bf16.mxu0 0
    %576 = vmatpush1.bf16.msra.mxu0 0
    %577 = vmatprep.subr.bf16.mxu0 0
    %578 = vmatpush1.bf16.msra.mxu0 0
    %579 = vmatprep.subr.bf16.mxu0 0
    %580 = vmatpush1.bf16.msra.mxu0 0
    %581 = vmatprep.mubr.bf16.mxu0 0
    %582 = vmatmul.mubr.bf16.gmra.mrb[0].mxu0 %v547
    %v583 = vpop.f32.mrb[0].mxu0
    %v584 = vadd.f32 0.0, %v583
    %v585 = vpop.f32.mrb[0].mxu0
    %v586 = vpop.f32.mrb[0].mxu0
    %v587 = vpop.f32.mrb[0].mxu0
    %588 = vdwg.mxu0
    %590 = vrot.lane.b32.xlu0 %v541, 64
    %v591 = vpop.permute.xlu0 %590
    %v593 = vsel %vm65, %v591, 0
    %595 = vmatprep.subr.bf16.mxu0 0
    %596 = vmatpush1.bf16.msra.mxu0 %v210
    %597 = vmatprep.subr.bf16.mxu0 0
    %598 = vmatpush1.bf16.msra.mxu0 %v211
    %599 = vmatprep.subr.bf16.mxu0 0
    %600 = vmatpush1.bf16.msra.mxu0 0
    %601 = vmatprep.subr.bf16.mxu0 0
    %602 = vmatpush1.bf16.msra.mxu0 0
    %603 = vmatprep.subr.bf16.mxu0 0
    %604 = vmatpush1.bf16.msra.mxu0 0
    %605 = vmatprep.subr.bf16.mxu0 0
    %606 = vmatpush1.bf16.msra.mxu0 0
    %607 = vmatprep.subr.bf16.mxu0 0
    %608 = vmatpush1.bf16.msra.mxu0 0
    %609 = vmatprep.subr.bf16.mxu0 0
    %610 = vmatpush1.bf16.msra.mxu0 0
    %611 = vmatprep.subr.bf16.mxu0 0
    %612 = vmatpush1.bf16.msra.mxu0 0
    %613 = vmatprep.subr.bf16.mxu0 0
    %614 = vmatpush1.bf16.msra.mxu0 0
    %615 = vmatprep.subr.bf16.mxu0 0
    %616 = vmatpush1.bf16.msra.mxu0 0
    %617 = vmatprep.subr.bf16.mxu0 0
    %618 = vmatpush1.bf16.msra.mxu0 0
    %619 = vmatprep.subr.bf16.mxu0 0
    %620 = vmatpush1.bf16.msra.mxu0 0
    %621 = vmatprep.subr.bf16.mxu0 0
    %622 = vmatpush1.bf16.msra.mxu0 0
    %623 = vmatprep.subr.bf16.mxu0 0
    %624 = vmatpush1.bf16.msra.mxu0 0
    %625 = vmatprep.subr.bf16.mxu0 0
    %626 = vmatpush1.bf16.msra.mxu0 0
    %627 = vmatprep.mubr.bf16.mxu0 0
    %628 = vmatmul.mubr.bf16.gmra.mrb[0].mxu0 %v593
    %v629 = vpop.f32.mrb[0].mxu0
    %v630 = vadd.f32 %v584, %v629
    %v631 = vpop.f32.mrb[0].mxu0
    %v632 = vpop.f32.mrb[0].mxu0
    %v633 = vpop.f32.mrb[0].mxu0
    %634 = vdwg.mxu0
    %v635 = vadd.f32 %v630, %v46
    %v636 = vxor.u32 %v635, 2147483648
    %v637 = vmul.f32 %v636, 1.442695
    %v638 = vpow.pop %v637
    %v639 = vadd.f32 %v638, 1.0
    %v640 = vrcp.pop %v639
    %v641 = vmul.f32 1.0, %v640
    %v642 = vtanh.pop %v635
    %v643 = vmul.f32 %v641, %v468
    %645 = vrot.lane.b32.xlu0 %v642, 32
    %v646 = vpop.permute.xlu0 %645
    %v648 = vmul.f32 %v641, %v646
    %650 = vrot.lane.b32.xlu0 %v648, 32
    %v651 = vpop.permute.xlu0 %650
    %v653 = vadd.f32 %v643, %v651
    %v654 = vtanh.pop %v653
    %656 = vrot.lane.b32.xlu0 %v654, 32
    %v657 = vpop.permute.xlu0 %656
    %v659 = vmul.f32 %v641, %v657
    %v660 = vld [vmem:[%s0 + $0x3] sm:$0x1]
    %661 = vmatprep.subr.bf16.mxu0 0
    %662 = vmatpush1.bf16.msra.mxu0 %v61
    %663 = vmatprep.subr.bf16.mxu0 0
    %664 = vmatpush1.bf16.msra.mxu0 %v62
    %665 = vmatprep.subr.bf16.mxu0 0
    %666 = vmatpush1.bf16.msra.mxu0 0
    %667 = vmatprep.subr.bf16.mxu0 0
    %668 = vmatpush1.bf16.msra.mxu0 0
    %669 = vmatprep.subr.bf16.mxu0 0
    %670 = vmatpush1.bf16.msra.mxu0 0
    %671 = vmatprep.subr.bf16.mxu0 0
    %672 = vmatpush1.bf16.msra.mxu0 0
    %673 = vmatprep.subr.bf16.mxu0 0
    %674 = vmatpush1.bf16.msra.mxu0 0
    %675 = vmatprep.subr.bf16.mxu0 0
    %676 = vmatpush1.bf16.msra.mxu0 0
    %677 = vmatprep.subr.bf16.mxu0 0
    %678 = vmatpush1.bf16.msra.mxu0 0
    %679 = vmatprep.subr.bf16.mxu0 0
    %680 = vmatpush1.bf16.msra.mxu0 0
    %681 = vmatprep.subr.bf16.mxu0 0
    %682 = vmatpush1.bf16.msra.mxu0 0
    %683 = vmatprep.subr.bf16.mxu0 0
    %684 = vmatpush1.bf16.msra.mxu0 0
    %685 = vmatprep.subr.bf16.mxu0 0
    %686 = vmatpush1.bf16.msra.mxu0 0
    %687 = vmatprep.subr.bf16.mxu0 0
    %688 = vmatpush1.bf16.msra.mxu0 0
    %689 = vmatprep.subr.bf16.mxu0 0
    %690 = vmatpush1.bf16.msra.mxu0 0
    %691 = vmatprep.subr.bf16.mxu0 0
    %692 = vmatpush1.bf16.msra.mxu0 0
    %693 = vmatprep.mubr.bf16.mxu0 0
    %694 = vmatmul.mubr.bf16.gmra.mrb[0].mxu0 %v593
    %v695 = vpop.f32.mrb[0].mxu0
    %v696 = vadd.f32 0.0, %v695
    %v697 = vpop.f32.mrb[0].mxu0
    %v698 = vpop.f32.mrb[0].mxu0
    %v699 = vpop.f32.mrb[0].mxu0
    %700 = vdwg.mxu0
    %v701 = vadd.f32 %v660, %v696
    %v702 = vxor.u32 %v701, 2147483648
    %v703 = vmul.f32 %v702, 1.442695
    %v704 = vpow.pop %v703
    %v705 = vadd.f32 %v704, 1.0
    %v706 = vrcp.pop %v705
    %v707 = vmul.f32 1.0, %v706
    %v708 = vtanh.pop %v701
    %v709 = vmul.f32 %v707, %v534
    %711 = vrot.lane.b32.xlu0 %v708, 32
    %v712 = vpop.permute.xlu0 %711
    %v714 = vmul.f32 %v707, %v712
    %716 = vrot.lane.b32.xlu0 %v714, 32
    %v717 = vpop.permute.xlu0 %716
    %v719 = vadd.f32 %v709, %v717
    %v720 = vtanh.pop %v719
    %722 = vrot.lane.b32.xlu0 %v720, 32
    %v723 = vpop.permute.xlu0 %722
    %v725 = vmul.f32 %v707, %v723
    %v726 = vpack.c.bf16 %v725, %v725
    %v727 = vpack.c.bf16 %v659, %v659
    %729 = vrot.lane.b32.xlu0 %v727, 64
    %v730 = vpop.permute.xlu0 %729
    %v732 = vsel %vm65, %v730, 0
    %734 = vmatprep.subr.bf16.mxu0 0
    %735 = vmatpush1.bf16.msra.mxu0 %v152
    %736 = vmatprep.subr.bf16.mxu0 0
    %737 = vmatpush1.bf16.msra.mxu0 %v153
    %738 = vmatprep.subr.bf16.mxu0 0
    %739 = vmatpush1.bf16.msra.mxu0 0
    %740 = vmatprep.subr.bf16.mxu0 0
    %741 = vmatpush1.bf16.msra.mxu0 0
    %742 = vmatprep.subr.bf16.mxu0 0
    %743 = vmatpush1.bf16.msra.mxu0 0
    %744 = vmatprep.subr.bf16.mxu0 0
    %745 = vmatpush1.bf16.msra.mxu0 0
    %746 = vmatprep.subr.bf16.mxu0 0
    %747 = vmatpush1.bf16.msra.mxu0 0
    %748 = vmatprep.subr.bf16.mxu0 0
    %749 = vmatpush1.bf16.msra.mxu0 0
    %750 = vmatprep.subr.bf16.mxu0 0
    %751 = vmatpush1.bf16.msra.mxu0 0
    %752 = vmatprep.subr.bf16.mxu0 0
    %753 = vmatpush1.bf16.msra.mxu0 0
    %754 = vmatprep.subr.bf16.mxu0 0
    %755 = vmatpush1.bf16.msra.mxu0 0
    %756 = vmatprep.subr.bf16.mxu0 0
    %757 = vmatpush1.bf16.msra.mxu0 0
    %758 = vmatprep.subr.bf16.mxu0 0
    %759 = vmatpush1.bf16.msra.mxu0 0
    %760 = vmatprep.subr.bf16.mxu0 0
    %761 = vmatpush1.bf16.msra.mxu0 0
    %762 = vmatprep.subr.bf16.mxu0 0
    %763 = vmatpush1.bf16.msra.mxu0 0
    %764 = vmatprep.subr.bf16.mxu0 0
    %765 = vmatpush1.bf16.msra.mxu0 0
    %766 = vmatprep.mubr.bf16.mxu0 0
    %767 = vmatmul.mubr.bf16.gmra.mrb[0].mxu0 %v732
    %v768 = vpop.f32.mrb[0].mxu0
    %v769 = vadd.f32 0.0, %v768
    %v770 = vpop.f32.mrb[0].mxu0
    %v771 = vpop.f32.mrb[0].mxu0
    %v772 = vpop.f32.mrb[0].mxu0
    %773 = vdwg.mxu0
    %775 = vrot.lane.b32.xlu0 %v726, 64
    %v776 = vpop.permute.xlu0 %775
    %v778 = vsel %vm65, %v776, 0
    %780 = vmatprep.subr.bf16.mxu0 0
    %781 = vmatpush1.bf16.msra.mxu0 %v210
    %782 = vmatprep.subr.bf16.mxu0 0
    %783 = vmatpush1.bf16.msra.mxu0 %v211
    %784 = vmatprep.subr.bf16.mxu0 0
    %785 = vmatpush1.bf16.msra.mxu0 0
    %786 = vmatprep.subr.bf16.mxu0 0
    %787 = vmatpush1.bf16.msra.mxu0 0
    %788 = vmatprep.subr.bf16.mxu0 0
    %789 = vmatpush1.bf16.msra.mxu0 0
    %790 = vmatprep.subr.bf16.mxu0 0
    %791 = vmatpush1.bf16.msra.mxu0 0
    %792 = vmatprep.subr.bf16.mxu0 0
    %793 = vmatpush1.bf16.msra.mxu0 0
    %794 = vmatprep.subr.bf16.mxu0 0
    %795 = vmatpush1.bf16.msra.mxu0 0
    %796 = vmatprep.subr.bf16.mxu0 0
    %797 = vmatpush1.bf16.msra.mxu0 0
    %798 = vmatprep.subr.bf16.mxu0 0
    %799 = vmatpush1.bf16.msra.mxu0 0
    %800 = vmatprep.subr.bf16.mxu0 0
    %801 = vmatpush1.bf16.msra.mxu0 0
    %802 = vmatprep.subr.bf16.mxu0 0
    %803 = vmatpush1.bf16.msra.mxu0 0
    %804 = vmatprep.subr.bf16.mxu0 0
    %805 = vmatpush1.bf16.msra.mxu0 0
    %806 = vmatprep.subr.bf16.mxu0 0
    %807 = vmatpush1.bf16.msra.mxu0 0
    %808 = vmatprep.subr.bf16.mxu0 0
    %809 = vmatpush1.bf16.msra.mxu0 0
    %810 = vmatprep.subr.bf16.mxu0 0
    %811 = vmatpush1.bf16.msra.mxu0 0
    %812 = vmatprep.mubr.bf16.mxu0 0
    %813 = vmatmul.mubr.bf16.gmra.mrb[0].mxu0 %v778
    %v814 = vpop.f32.mrb[0].mxu0
    %v815 = vadd.f32 %v769, %v814
    %v816 = vpop.f32.mrb[0].mxu0
    %v817 = vpop.f32.mrb[0].mxu0
    %v818 = vpop.f32.mrb[0].mxu0
    %819 = vdwg.mxu0
    %v820 = vadd.f32 %v815, %v46
    %v821 = vxor.u32 %v820, 2147483648
    %v822 = vmul.f32 %v821, 1.442695
    %v823 = vpow.pop %v822
    %v824 = vadd.f32 %v823, 1.0
    %v825 = vrcp.pop %v824
    %v826 = vmul.f32 1.0, %v825
    %v827 = vtanh.pop %v820
    %v828 = vmul.f32 %v826, %v653
    %830 = vrot.lane.b32.xlu0 %v827, 32
    %v831 = vpop.permute.xlu0 %830
    %v833 = vmul.f32 %v826, %v831
    %835 = vrot.lane.b32.xlu0 %v833, 32
    %v836 = vpop.permute.xlu0 %835
    %v838 = vadd.f32 %v828, %v836
    %v839 = vtanh.pop %v838
    %841 = vrot.lane.b32.xlu0 %v839, 32
    %v842 = vpop.permute.xlu0 %841
    %v844 = vmul.f32 %v826, %v842
    %v845 = vld [vmem:[%s0 + $0x4] sm:$0x1]
    %846 = vmatprep.subr.bf16.mxu0 0
    %847 = vmatpush1.bf16.msra.mxu0 %v61
    %848 = vmatprep.subr.bf16.mxu0 0
    %849 = vmatpush1.bf16.msra.mxu0 %v62
    %850 = vmatprep.subr.bf16.mxu0 0
    %851 = vmatpush1.bf16.msra.mxu0 0
    %852 = vmatprep.subr.bf16.mxu0 0
    %853 = vmatpush1.bf16.msra.mxu0 0
    %854 = vmatprep.subr.bf16.mxu0 0
    %855 = vmatpush1.bf16.msra.mxu0 0
    %856 = vmatprep.subr.bf16.mxu0 0
    %857 = vmatpush1.bf16.msra.mxu0 0
    %858 = vmatprep.subr.bf16.mxu0 0
    %859 = vmatpush1.bf16.msra.mxu0 0
    %860 = vmatprep.subr.bf16.mxu0 0
    %861 = vmatpush1.bf16.msra.mxu0 0
    %862 = vmatprep.subr.bf16.mxu0 0
    %863 = vmatpush1.bf16.msra.mxu0 0
    %864 = vmatprep.subr.bf16.mxu0 0
    %865 = vmatpush1.bf16.msra.mxu0 0
    %866 = vmatprep.subr.bf16.mxu0 0
    %867 = vmatpush1.bf16.msra.mxu0 0
    %868 = vmatprep.subr.bf16.mxu0 0
    %869 = vmatpush1.bf16.msra.mxu0 0
    %870 = vmatprep.subr.bf16.mxu0 0
    %871 = vmatpush1.bf16.msra.mxu0 0
    %872 = vmatprep.subr.bf16.mxu0 0
    %873 = vmatpush1.bf16.msra.mxu0 0
    %874 = vmatprep.subr.bf16.mxu0 0
    %875 = vmatpush1.bf16.msra.mxu0 0
    %876 = vmatprep.subr.bf16.mxu0 0
    %877 = vmatpush1.bf16.msra.mxu0 0
    %878 = vmatprep.mubr.bf16.mxu0 0
    %879 = vmatmul.mubr.bf16.gmra.mrb[0].mxu0 %v778
    %v880 = vpop.f32.mrb[0].mxu0
    %v881 = vadd.f32 0.0, %v880
    %v882 = vpop.f32.mrb[0].mxu0
    %v883 = vpop.f32.mrb[0].mxu0
    %v884 = vpop.f32.mrb[0].mxu0
    %885 = vdwg.mxu0
    %v886 = vadd.f32 %v845, %v881
    %v887 = vxor.u32 %v886, 2147483648
    %v888 = vmul.f32 %v887, 1.442695
    %v889 = vpow.pop %v888
    %v890 = vadd.f32 %v889, 1.0
    %v891 = vrcp.pop %v890
    %v892 = vmul.f32 1.0, %v891
    %v893 = vtanh.pop %v886
    %v894 = vmul.f32 %v892, %v719
    %896 = vrot.lane.b32.xlu0 %v893, 32
    %v897 = vpop.permute.xlu0 %896
    %v899 = vmul.f32 %v892, %v897
    %901 = vrot.lane.b32.xlu0 %v899, 32
    %v902 = vpop.permute.xlu0 %901
    %v904 = vadd.f32 %v894, %v902
    %v905 = vtanh.pop %v904
    %907 = vrot.lane.b32.xlu0 %v905, 32
    %v908 = vpop.permute.xlu0 %907
    %v910 = vmul.f32 %v892, %v908
    %v911 = vpack.c.bf16 %v910, %v910
    %v912 = vpack.c.bf16 %v844, %v844
    %914 = vrot.lane.b32.xlu0 %v912, 64
    %v915 = vpop.permute.xlu0 %914
    %v917 = vsel %vm65, %v915, 0
    %919 = vmatprep.subr.bf16.mxu0 0
    %920 = vmatpush1.bf16.msra.mxu0 %v152
    %921 = vmatprep.subr.bf16.mxu0 0
    %922 = vmatpush1.bf16.msra.mxu0 %v153
    %923 = vmatprep.subr.bf16.mxu0 0
    %924 = vmatpush1.bf16.msra.mxu0 0
    %925 = vmatprep.subr.bf16.mxu0 0
    %926 = vmatpush1.bf16.msra.mxu0 0
    %927 = vmatprep.subr.bf16.mxu0 0
    %928 = vmatpush1.bf16.msra.mxu0 0
    %929 = vmatprep.subr.bf16.mxu0 0
    %930 = vmatpush1.bf16.msra.mxu0 0
    %931 = vmatprep.subr.bf16.mxu0 0
    %932 = vmatpush1.bf16.msra.mxu0 0
    %933 = vmatprep.subr.bf16.mxu0 0
    %934 = vmatpush1.bf16.msra.mxu0 0
    %935 = vmatprep.subr.bf16.mxu0 0
    %936 = vmatpush1.bf16.msra.mxu0 0
    %937 = vmatprep.subr.bf16.mxu0 0
    %938 = vmatpush1.bf16.msra.mxu0 0
    %939 = vmatprep.subr.bf16.mxu0 0
    %940 = vmatpush1.bf16.msra.mxu0 0
    %941 = vmatprep.subr.bf16.mxu0 0
    %942 = vmatpush1.bf16.msra.mxu0 0
    %943 = vmatprep.subr.bf16.mxu0 0
    %944 = vmatpush1.bf16.msra.mxu0 0
    %945 = vmatprep.subr.bf16.mxu0 0
    %946 = vmatpush1.bf16.msra.mxu0 0
    %947 = vmatprep.subr.bf16.mxu0 0
    %948 = vmatpush1.bf16.msra.mxu0 0
    %949 = vmatprep.subr.bf16.mxu0 0
    %950 = vmatpush1.bf16.msra.mxu0 0
    %951 = vmatprep.mubr.bf16.mxu0 0
    %952 = vmatmul.mubr.bf16.gmra.mrb[0].mxu0 %v917
    %v953 = vpop.f32.mrb[0].mxu0
    %v954 = vadd.f32 0.0, %v953
    %v955 = vpop.f32.mrb[0].mxu0
    %v956 = vpop.f32.mrb[0].mxu0
    %v957 = vpop.f32.mrb[0].mxu0
    %958 = vdwg.mxu0
    %960 = vrot.lane.b32.xlu0 %v911, 64
    %v961 = vpop.permute.xlu0 %960
    %v963 = vsel %vm65, %v961, 0
    %965 = vmatprep.subr.bf16.mxu0 0
    %966 = vmatpush1.bf16.msra.mxu0 %v210
    %967 = vmatprep.subr.bf16.mxu0 0
    %968 = vmatpush1.bf16.msra.mxu0 %v211
    %969 = vmatprep.subr.bf16.mxu0 0
    %970 = vmatpush1.bf16.msra.mxu0 0
    %971 = vmatprep.subr.bf16.mxu0 0
    %972 = vmatpush1.bf16.msra.mxu0 0
    %973 = vmatprep.subr.bf16.mxu0 0
    %974 = vmatpush1.bf16.msra.mxu0 0
    %975 = vmatprep.subr.bf16.mxu0 0
    %976 = vmatpush1.bf16.msra.mxu0 0
    %977 = vmatprep.subr.bf16.mxu0 0
    %978 = vmatpush1.bf16.msra.mxu0 0
    %979 = vmatprep.subr.bf16.mxu0 0
    %980 = vmatpush1.bf16.msra.mxu0 0
    %981 = vmatprep.subr.bf16.mxu0 0
    %982 = vmatpush1.bf16.msra.mxu0 0
    %983 = vmatprep.subr.bf16.mxu0 0
    %984 = vmatpush1.bf16.msra.mxu0 0
    %985 = vmatprep.subr.bf16.mxu0 0
    %986 = vmatpush1.bf16.msra.mxu0 0
    %987 = vmatprep.subr.bf16.mxu0 0
    %988 = vmatpush1.bf16.msra.mxu0 0
    %989 = vmatprep.subr.bf16.mxu0 0
    %990 = vmatpush1.bf16.msra.mxu0 0
    %991 = vmatprep.subr.bf16.mxu0 0
    %992 = vmatpush1.bf16.msra.mxu0 0
    %993 = vmatprep.subr.bf16.mxu0 0
    %994 = vmatpush1.bf16.msra.mxu0 0
    %995 = vmatprep.subr.bf16.mxu0 0
    %996 = vmatpush1.bf16.msra.mxu0 0
    %997 = vmatprep.mubr.bf16.mxu0 0
    %998 = vmatmul.mubr.bf16.gmra.mrb[0].mxu0 %v963
    %v999 = vpop.f32.mrb[0].mxu0
    %v1000 = vadd.f32 %v954, %v999
    %v1001 = vpop.f32.mrb[0].mxu0
    %v1002 = vpop.f32.mrb[0].mxu0
    %v1003 = vpop.f32.mrb[0].mxu0
    %1004 = vdwg.mxu0
    %v1005 = vadd.f32 %v1000, %v46
    %v1006 = vxor.u32 %v1005, 2147483648
    %v1007 = vmul.f32 %v1006, 1.442695
    %v1008 = vpow.pop %v1007
    %v1009 = vadd.f32 %v1008, 1.0
    %v1010 = vrcp.pop %v1009
    %v1011 = vmul.f32 1.0, %v1010
    %v1012 = vtanh.pop %v1005
    %v1013 = vmul.f32 %v1011, %v838
    %1015 = vrot.lane.b32.xlu0 %v1012, 32
    %v1016 = vpop.permute.xlu0 %1015
    %v1018 = vmul.f32 %v1011, %v1016
    %1020 = vrot.lane.b32.xlu0 %v1018, 32
    %v1021 = vpop.permute.xlu0 %1020
    %v1023 = vadd.f32 %v1013, %v1021
    %v1024 = vtanh.pop %v1023
    %1026 = vrot.lane.b32.xlu0 %v1024, 32
    %v1027 = vpop.permute.xlu0 %1026
    %v1029 = vmul.f32 %v1011, %v1027
    %v1030 = vld [vmem:[%s0 + $0x5] sm:$0x1]
    %1031 = vmatprep.subr.bf16.mxu0 0
    %1032 = vmatpush1.bf16.msra.mxu0 %v61
    %1033 = vmatprep.subr.bf16.mxu0 0
    %1034 = vmatpush1.bf16.msra.mxu0 %v62
    %1035 = vmatprep.subr.bf16.mxu0 0
    %1036 = vmatpush1.bf16.msra.mxu0 0
    %1037 = vmatprep.subr.bf16.mxu0 0
    %1038 = vmatpush1.bf16.msra.mxu0 0
    %1039 = vmatprep.subr.bf16.mxu0 0
    %1040 = vmatpush1.bf16.msra.mxu0 0
    %1041 = vmatprep.subr.bf16.mxu0 0
    %1042 = vmatpush1.bf16.msra.mxu0 0
    %1043 = vmatprep.subr.bf16.mxu0 0
    %1044 = vmatpush1.bf16.msra.mxu0 0
    %1045 = vmatprep.subr.bf16.mxu0 0
    %1046 = vmatpush1.bf16.msra.mxu0 0
    %1047 = vmatprep.subr.bf16.mxu0 0
    %1048 = vmatpush1.bf16.msra.mxu0 0
    %1049 = vmatprep.subr.bf16.mxu0 0
    %1050 = vmatpush1.bf16.msra.mxu0 0
    %1051 = vmatprep.subr.bf16.mxu0 0
    %1052 = vmatpush1.bf16.msra.mxu0 0
    %1053 = vmatprep.subr.bf16.mxu0 0
    %1054 = vmatpush1.bf16.msra.mxu0 0
    %1055 = vmatprep.subr.bf16.mxu0 0
    %1056 = vmatpush1.bf16.msra.mxu0 0
    %1057 = vmatprep.subr.bf16.mxu0 0
    %1058 = vmatpush1.bf16.msra.mxu0 0
    %1059 = vmatprep.subr.bf16.mxu0 0
    %1060 = vmatpush1.bf16.msra.mxu0 0
    %1061 = vmatprep.subr.bf16.mxu0 0
    %1062 = vmatpush1.bf16.msra.mxu0 0
    %1063 = vmatprep.mubr.bf16.mxu0 0
    %1064 = vmatmul.mubr.bf16.gmra.mrb[0].mxu0 %v963
    %v1065 = vpop.f32.mrb[0].mxu0
    %v1066 = vadd.f32 0.0, %v1065
    %v1067 = vpop.f32.mrb[0].mxu0
    %v1068 = vpop.f32.mrb[0].mxu0
    %v1069 = vpop.f32.mrb[0].mxu0
    %1070 = vdwg.mxu0
    %v1071 = vadd.f32 %v1030, %v1066
    %v1072 = vxor.u32 %v1071, 2147483648
    %v1073 = vmul.f32 %v1072, 1.442695
    %v1074 = vpow.pop %v1073
    %v1075 = vadd.f32 %v1074, 1.0
    %v1076 = vrcp.pop %v1075
    %v1077 = vmul.f32 1.0, %v1076
    %v1078 = vtanh.pop %v1071
    %v1079 = vmul.f32 %v1077, %v904
    %1081 = vrot.lane.b32.xlu0 %v1078, 32
    %v1082 = vpop.permute.xlu0 %1081
    %v1084 = vmul.f32 %v1077, %v1082
    %1086 = vrot.lane.b32.xlu0 %v1084, 32
    %v1087 = vpop.permute.xlu0 %1086
    %v1089 = vadd.f32 %v1079, %v1087
    %v1090 = vtanh.pop %v1089
    %1092 = vrot.lane.b32.xlu0 %v1090, 32
    %v1093 = vpop.permute.xlu0 %1092
    %v1095 = vmul.f32 %v1077, %v1093
    %v1096 = vpack.c.bf16 %v1095, %v1095
    %v1097 = vpack.c.bf16 %v1029, %v1029
    %1099 = vrot.lane.b32.xlu0 %v1097, 64
    %v1100 = vpop.permute.xlu0 %1099
    %v1102 = vsel %vm65, %v1100, 0
    %1104 = vmatprep.subr.bf16.mxu0 0
    %1105 = vmatpush1.bf16.msra.mxu0 %v152
    %1106 = vmatprep.subr.bf16.mxu0 0
    %1107 = vmatpush1.bf16.msra.mxu0 %v153
    %1108 = vmatprep.subr.bf16.mxu0 0
    %1109 = vmatpush1.bf16.msra.mxu0 0
    %1110 = vmatprep.subr.bf16.mxu0 0
    %1111 = vmatpush1.bf16.msra.mxu0 0
    %1112 = vmatprep.subr.bf16.mxu0 0
    %1113 = vmatpush1.bf16.msra.mxu0 0
    %1114 = vmatprep.subr.bf16.mxu0 0
    %1115 = vmatpush1.bf16.msra.mxu0 0
    %1116 = vmatprep.subr.bf16.mxu0 0
    %1117 = vmatpush1.bf16.msra.mxu0 0
    %1118 = vmatprep.subr.bf16.mxu0 0
    %1119 = vmatpush1.bf16.msra.mxu0 0
    %1120 = vmatprep.subr.bf16.mxu0 0
    %1121 = vmatpush1.bf16.msra.mxu0 0
    %1122 = vmatprep.subr.bf16.mxu0 0
    %1123 = vmatpush1.bf16.msra.mxu0 0
    %1124 = vmatprep.subr.bf16.mxu0 0
    %1125 = vmatpush1.bf16.msra.mxu0 0
    %1126 = vmatprep.subr.bf16.mxu0 0
    %1127 = vmatpush1.bf16.msra.mxu0 0
    %1128 = vmatprep.subr.bf16.mxu0 0
    %1129 = vmatpush1.bf16.msra.mxu0 0
    %1130 = vmatprep.subr.bf16.mxu0 0
    %1131 = vmatpush1.bf16.msra.mxu0 0
    %1132 = vmatprep.subr.bf16.mxu0 0
    %1133 = vmatpush1.bf16.msra.mxu0 0
    %1134 = vmatprep.subr.bf16.mxu0 0
    %1135 = vmatpush1.bf16.msra.mxu0 0
    %1136 = vmatprep.mubr.bf16.mxu0 0
    %1137 = vmatmul.mubr.bf16.gmra.mrb[0].mxu0 %v1102
    %v1138 = vpop.f32.mrb[0].mxu0
    %v1139 = vadd.f32 0.0, %v1138
    %v1140 = vpop.f32.mrb[0].mxu0
    %v1141 = vpop.f32.mrb[0].mxu0
    %v1142 = vpop.f32.mrb[0].mxu0
    %1143 = vdwg.mxu0
    %1145 = vrot.lane.b32.xlu0 %v1096, 64
    %v1146 = vpop.permute.xlu0 %1145
    %v1148 = vsel %vm65, %v1146, 0
    %1150 = vmatprep.subr.bf16.mxu0 0
    %1151 = vmatpush1.bf16.msra.mxu0 %v210
    %1152 = vmatprep.subr.bf16.mxu0 0
    %1153 = vmatpush1.bf16.msra.mxu0 %v211
    %1154 = vmatprep.subr.bf16.mxu0 0
    %1155 = vmatpush1.bf16.msra.mxu0 0
    %1156 = vmatprep.subr.bf16.mxu0 0
    %1157 = vmatpush1.bf16.msra.mxu0 0
    %1158 = vmatprep.subr.bf16.mxu0 0
    %1159 = vmatpush1.bf16.msra.mxu0 0
    %1160 = vmatprep.subr.bf16.mxu0 0
    %1161 = vmatpush1.bf16.msra.mxu0 0
    %1162 = vmatprep.subr.bf16.mxu0 0
    %1163 = vmatpush1.bf16.msra.mxu0 0
    %1164 = vmatprep.subr.bf16.mxu0 0
    %1165 = vmatpush1.bf16.msra.mxu0 0
    %1166 = vmatprep.subr.bf16.mxu0 0
    %1167 = vmatpush1.bf16.msra.mxu0 0
    %1168 = vmatprep.subr.bf16.mxu0 0
    %1169 = vmatpush1.bf16.msra.mxu0 0
    %1170 = vmatprep.subr.bf16.mxu0 0
    %1171 = vmatpush1.bf16.msra.mxu0 0
    %1172 = vmatprep.subr.bf16.mxu0 0
    %1173 = vmatpush1.bf16.msra.mxu0 0
    %1174 = vmatprep.subr.bf16.mxu0 0
    %1175 = vmatpush1.bf16.msra.mxu0 0
    %1176 = vmatprep.subr.bf16.mxu0 0
    %1177 = vmatpush1.bf16.msra.mxu0 0
    %1178 = vmatprep.subr.bf16.mxu0 0
    %1179 = vmatpush1.bf16.msra.mxu0 0
    %1180 = vmatprep.subr.bf16.mxu0 0
    %1181 = vmatpush1.bf16.msra.mxu0 0
    %1182 = vmatprep.mubr.bf16.mxu0 0
    %1183 = vmatmul.mubr.bf16.gmra.mrb[0].mxu0 %v1148
    %v1184 = vpop.f32.mrb[0].mxu0
    %v1185 = vadd.f32 %v1139, %v1184
    %v1186 = vpop.f32.mrb[0].mxu0
    %v1187 = vpop.f32.mrb[0].mxu0
    %v1188 = vpop.f32.mrb[0].mxu0
    %1189 = vdwg.mxu0
    %v1190 = vadd.f32 %v1185, %v46
    %v1191 = vxor.u32 %v1190, 2147483648
    %v1192 = vmul.f32 %v1191, 1.442695
    %v1193 = vpow.pop %v1192
    %v1194 = vadd.f32 %v1193, 1.0
    %v1195 = vrcp.pop %v1194
    %v1196 = vmul.f32 1.0, %v1195
    %v1197 = vtanh.pop %v1190
    %v1198 = vmul.f32 %v1196, %v1023
    %1200 = vrot.lane.b32.xlu0 %v1197, 32
    %v1201 = vpop.permute.xlu0 %1200
    %v1203 = vmul.f32 %v1196, %v1201
    %1205 = vrot.lane.b32.xlu0 %v1203, 32
    %v1206 = vpop.permute.xlu0 %1205
    %v1208 = vadd.f32 %v1198, %v1206
    %v1209 = vtanh.pop %v1208
    %1211 = vrot.lane.b32.xlu0 %v1209, 32
    %v1212 = vpop.permute.xlu0 %1211
    %v1214 = vmul.f32 %v1196, %v1212
    %v1215 = vld [vmem:[%s0 + $0x6] sm:$0x1]
    %1216 = vmatprep.subr.bf16.mxu0 0
    %1217 = vmatpush1.bf16.msra.mxu0 %v61
    %1218 = vmatprep.subr.bf16.mxu0 0
    %1219 = vmatpush1.bf16.msra.mxu0 %v62
    %1220 = vmatprep.subr.bf16.mxu0 0
    %1221 = vmatpush1.bf16.msra.mxu0 0
    %1222 = vmatprep.subr.bf16.mxu0 0
    %1223 = vmatpush1.bf16.msra.mxu0 0
    %1224 = vmatprep.subr.bf16.mxu0 0
    %1225 = vmatpush1.bf16.msra.mxu0 0
    %1226 = vmatprep.subr.bf16.mxu0 0
    %1227 = vmatpush1.bf16.msra.mxu0 0
    %1228 = vmatprep.subr.bf16.mxu0 0
    %1229 = vmatpush1.bf16.msra.mxu0 0
    %1230 = vmatprep.subr.bf16.mxu0 0
    %1231 = vmatpush1.bf16.msra.mxu0 0
    %1232 = vmatprep.subr.bf16.mxu0 0
    %1233 = vmatpush1.bf16.msra.mxu0 0
    %1234 = vmatprep.subr.bf16.mxu0 0
    %1235 = vmatpush1.bf16.msra.mxu0 0
    %1236 = vmatprep.subr.bf16.mxu0 0
    %1237 = vmatpush1.bf16.msra.mxu0 0
    %1238 = vmatprep.subr.bf16.mxu0 0
    %1239 = vmatpush1.bf16.msra.mxu0 0
    %1240 = vmatprep.subr.bf16.mxu0 0
    %1241 = vmatpush1.bf16.msra.mxu0 0
    %1242 = vmatprep.subr.bf16.mxu0 0
    %1243 = vmatpush1.bf16.msra.mxu0 0
    %1244 = vmatprep.subr.bf16.mxu0 0
    %1245 = vmatpush1.bf16.msra.mxu0 0
    %1246 = vmatprep.subr.bf16.mxu0 0
    %1247 = vmatpush1.bf16.msra.mxu0 0
    %1248 = vmatprep.mubr.bf16.mxu0 0
    %1249 = vmatmul.mubr.bf16.gmra.mrb[0].mxu0 %v1148
    %v1250 = vpop.f32.mrb[0].mxu0
    %v1251 = vadd.f32 0.0, %v1250
    %v1252 = vpop.f32.mrb[0].mxu0
    %v1253 = vpop.f32.mrb[0].mxu0
    %v1254 = vpop.f32.mrb[0].mxu0
    %1255 = vdwg.mxu0
    %v1256 = vadd.f32 %v1215, %v1251
    %v1257 = vxor.u32 %v1256, 2147483648
    %v1258 = vmul.f32 %v1257, 1.442695
    %v1259 = vpow.pop %v1258
    %v1260 = vadd.f32 %v1259, 1.0
    %v1261 = vrcp.pop %v1260
    %v1262 = vmul.f32 1.0, %v1261
    %v1263 = vtanh.pop %v1256
    %v1264 = vmul.f32 %v1262, %v1089
    %1266 = vrot.lane.b32.xlu0 %v1263, 32
    %v1267 = vpop.permute.xlu0 %1266
    %v1269 = vmul.f32 %v1262, %v1267
    %1271 = vrot.lane.b32.xlu0 %v1269, 32
    %v1272 = vpop.permute.xlu0 %1271
    %v1274 = vadd.f32 %v1264, %v1272
    %v1275 = vtanh.pop %v1274
    %1277 = vrot.lane.b32.xlu0 %v1275, 32
    %v1278 = vpop.permute.xlu0 %1277
    %v1280 = vmul.f32 %v1262, %v1278
    %v1281 = vpack.c.bf16 %v1280, %v1280
    %v1282 = vpack.c.bf16 %v1214, %v1214
    %1284 = vrot.lane.b32.xlu0 %v1282, 64
    %v1285 = vpop.permute.xlu0 %1284
    %v1287 = vsel %vm65, %v1285, 0
    %1289 = vmatprep.subr.bf16.mxu0 0
    %1290 = vmatpush1.bf16.msra.mxu0 %v152
    %1291 = vmatprep.subr.bf16.mxu0 0
    %1292 = vmatpush1.bf16.msra.mxu0 %v153
    %1293 = vmatprep.subr.bf16.mxu0 0
    %1294 = vmatpush1.bf16.msra.mxu0 0
    %1295 = vmatprep.subr.bf16.mxu0 0
    %1296 = vmatpush1.bf16.msra.mxu0 0
    %1297 = vmatprep.subr.bf16.mxu0 0
    %1298 = vmatpush1.bf16.msra.mxu0 0
    %1299 = vmatprep.subr.bf16.mxu0 0
    %1300 = vmatpush1.bf16.msra.mxu0 0
    %1301 = vmatprep.subr.bf16.mxu0 0
    %1302 = vmatpush1.bf16.msra.mxu0 0
    %1303 = vmatprep.subr.bf16.mxu0 0
    %1304 = vmatpush1.bf16.msra.mxu0 0
    %1305 = vmatprep.subr.bf16.mxu0 0
    %1306 = vmatpush1.bf16.msra.mxu0 0
    %1307 = vmatprep.subr.bf16.mxu0 0
    %1308 = vmatpush1.bf16.msra.mxu0 0
    %1309 = vmatprep.subr.bf16.mxu0 0
    %1310 = vmatpush1.bf16.msra.mxu0 0
    %1311 = vmatprep.subr.bf16.mxu0 0
    %1312 = vmatpush1.bf16.msra.mxu0 0
    %1313 = vmatprep.subr.bf16.mxu0 0
    %1314 = vmatpush1.bf16.msra.mxu0 0
    %1315 = vmatprep.subr.bf16.mxu0 0
    %1316 = vmatpush1.bf16.msra.mxu0 0
    %1317 = vmatprep.subr.bf16.mxu0 0
    %1318 = vmatpush1.bf16.msra.mxu0 0
    %1319 = vmatprep.subr.bf16.mxu0 0
    %1320 = vmatpush1.bf16.msra.mxu0 0
    %1321 = vmatprep.mubr.bf16.mxu0 0
    %1322 = vmatmul.mubr.bf16.gmra.mrb[0].mxu0 %v1287
    %v1323 = vpop.f32.mrb[0].mxu0
    %v1324 = vadd.f32 0.0, %v1323
    %v1325 = vpop.f32.mrb[0].mxu0
    %v1326 = vpop.f32.mrb[0].mxu0
    %v1327 = vpop.f32.mrb[0].mxu0
    %1328 = vdwg.mxu0
    %1330 = vrot.lane.b32.xlu0 %v1281, 64
    %v1331 = vpop.permute.xlu0 %1330
    %v1333 = vsel %vm65, %v1331, 0
    %1335 = vmatprep.subr.bf16.mxu0 0
    %1336 = vmatpush1.bf16.msra.mxu0 %v210
    %1337 = vmatprep.subr.bf16.mxu0 0
    %1338 = vmatpush1.bf16.msra.mxu0 %v211
    %1339 = vmatprep.subr.bf16.mxu0 0
    %1340 = vmatpush1.bf16.msra.mxu0 0
    %1341 = vmatprep.subr.bf16.mxu0 0
    %1342 = vmatpush1.bf16.msra.mxu0 0
    %1343 = vmatprep.subr.bf16.mxu0 0
    %1344 = vmatpush1.bf16.msra.mxu0 0
    %1345 = vmatprep.subr.bf16.mxu0 0
    %1346 = vmatpush1.bf16.msra.mxu0 0
    %1347 = vmatprep.subr.bf16.mxu0 0
    %1348 = vmatpush1.bf16.msra.mxu0 0
    %1349 = vmatprep.subr.bf16.mxu0 0
    %1350 = vmatpush1.bf16.msra.mxu0 0
    %1351 = vmatprep.subr.bf16.mxu0 0
    %1352 = vmatpush1.bf16.msra.mxu0 0
    %1353 = vmatprep.subr.bf16.mxu0 0
    %1354 = vmatpush1.bf16.msra.mxu0 0
    %1355 = vmatprep.subr.bf16.mxu0 0
    %1356 = vmatpush1.bf16.msra.mxu0 0
    %1357 = vmatprep.subr.bf16.mxu0 0
    %1358 = vmatpush1.bf16.msra.mxu0 0
    %1359 = vmatprep.subr.bf16.mxu0 0
    %1360 = vmatpush1.bf16.msra.mxu0 0
    %1361 = vmatprep.subr.bf16.mxu0 0
    %1362 = vmatpush1.bf16.msra.mxu0 0
    %1363 = vmatprep.subr.bf16.mxu0 0
    %1364 = vmatpush1.bf16.msra.mxu0 0
    %1365 = vmatprep.subr.bf16.mxu0 0
    %1366 = vmatpush1.bf16.msra.mxu0 0
    %1367 = vmatprep.mubr.bf16.mxu0 0
    %1368 = vmatmul.mubr.bf16.gmra.mrb[0].mxu0 %v1333
    %v1369 = vpop.f32.mrb[0].mxu0
    %v1370 = vadd.f32 %v1324, %v1369
    %v1371 = vpop.f32.mrb[0].mxu0
    %v1372 = vpop.f32.mrb[0].mxu0
    %v1373 = vpop.f32.mrb[0].mxu0
    %1374 = vdwg.mxu0
    %v1375 = vadd.f32 %v1370, %v46
    %v1376 = vxor.u32 %v1375, 2147483648
    %v1377 = vmul.f32 %v1376, 1.442695
    %v1378 = vpow.pop %v1377
    %v1379 = vadd.f32 %v1378, 1.0
    %v1380 = vrcp.pop %v1379
    %v1381 = vmul.f32 1.0, %v1380
    %v1382 = vtanh.pop %v1375
    %v1383 = vmul.f32 %v1381, %v1208
    %1385 = vrot.lane.b32.xlu0 %v1382, 32
    %v1386 = vpop.permute.xlu0 %1385
    %v1388 = vmul.f32 %v1381, %v1386
    %1390 = vrot.lane.b32.xlu0 %v1388, 32
    %v1391 = vpop.permute.xlu0 %1390
    %v1393 = vadd.f32 %v1383, %v1391
    %v1394 = vtanh.pop %v1393
    %1396 = vrot.lane.b32.xlu0 %v1394, 32
    %v1397 = vpop.permute.xlu0 %1396
    %v1399 = vmul.f32 %v1381, %v1397
    %v1400 = vld [vmem:[%s0 + $0x7] sm:$0x1]
    %1401 = vmatprep.subr.bf16.mxu0 0
    %1402 = vmatpush1.bf16.msra.mxu0 %v61
    %1403 = vmatprep.subr.bf16.mxu0 0
    %1404 = vmatpush1.bf16.msra.mxu0 %v62
    %1405 = vmatprep.subr.bf16.mxu0 0
    %1406 = vmatpush1.bf16.msra.mxu0 0
    %1407 = vmatprep.subr.bf16.mxu0 0
    %1408 = vmatpush1.bf16.msra.mxu0 0
    %1409 = vmatprep.subr.bf16.mxu0 0
    %1410 = vmatpush1.bf16.msra.mxu0 0
    %1411 = vmatprep.subr.bf16.mxu0 0
    %1412 = vmatpush1.bf16.msra.mxu0 0
    %1413 = vmatprep.subr.bf16.mxu0 0
    %1414 = vmatpush1.bf16.msra.mxu0 0
    %1415 = vmatprep.subr.bf16.mxu0 0
    %1416 = vmatpush1.bf16.msra.mxu0 0
    %1417 = vmatprep.subr.bf16.mxu0 0
    %1418 = vmatpush1.bf16.msra.mxu0 0
    %1419 = vmatprep.subr.bf16.mxu0 0
    %1420 = vmatpush1.bf16.msra.mxu0 0
    %1421 = vmatprep.subr.bf16.mxu0 0
    %1422 = vmatpush1.bf16.msra.mxu0 0
    %1423 = vmatprep.subr.bf16.mxu0 0
    %1424 = vmatpush1.bf16.msra.mxu0 0
    %1425 = vmatprep.subr.bf16.mxu0 0
    %1426 = vmatpush1.bf16.msra.mxu0 0
    %1427 = vmatprep.subr.bf16.mxu0 0
    %1428 = vmatpush1.bf16.msra.mxu0 0
    %1429 = vmatprep.subr.bf16.mxu0 0
    %1430 = vmatpush1.bf16.msra.mxu0 0
    %1431 = vmatprep.subr.bf16.mxu0 0
    %1432 = vmatpush1.bf16.msra.mxu0 0
    %1433 = vmatprep.mubr.bf16.mxu0 0
    %1434 = vmatmul.mubr.bf16.gmra.mrb[0].mxu0 %v1333
    %v1435 = vpop.f32.mrb[0].mxu0
    %v1436 = vadd.f32 0.0, %v1435
    %v1437 = vpop.f32.mrb[0].mxu0
    %v1438 = vpop.f32.mrb[0].mxu0
    %v1439 = vpop.f32.mrb[0].mxu0
    %1440 = vdwg.mxu0
    %v1441 = vadd.f32 %v1400, %v1436
    %v1442 = vxor.u32 %v1441, 2147483648
    %v1443 = vmul.f32 %v1442, 1.442695
    %v1444 = vpow.pop %v1443
    %v1445 = vadd.f32 %v1444, 1.0
    %v1446 = vrcp.pop %v1445
    %v1447 = vmul.f32 1.0, %v1446
    %v1448 = vtanh.pop %v1441
    %v1449 = vmul.f32 %v1447, %v1274
    %1451 = vrot.lane.b32.xlu0 %v1448, 32
    %v1452 = vpop.permute.xlu0 %1451
    %v1454 = vmul.f32 %v1447, %v1452
    %1456 = vrot.lane.b32.xlu0 %v1454, 32
    %v1457 = vpop.permute.xlu0 %1456
    %v1459 = vadd.f32 %v1449, %v1457
    %v1460 = vtanh.pop %v1459
    %1462 = vrot.lane.b32.xlu0 %v1460, 32
    %v1463 = vpop.permute.xlu0 %1462
    %v1465 = vmul.f32 %v1447, %v1463
    %v1466 = vpack.c.bf16 %v1465, %v1465
    %v1467 = vpack.c.bf16 %v1399, %v1399
    %1469 = vrot.lane.b32.xlu0 %v1467, 64
    %v1470 = vpop.permute.xlu0 %1469
    %v1472 = vsel %vm65, %v1470, 0
    %1474 = vmatprep.subr.bf16.mxu0 0
    %1475 = vmatpush1.bf16.msra.mxu0 %v152
    %1476 = vmatprep.subr.bf16.mxu0 0
    %1477 = vmatpush1.bf16.msra.mxu0 %v153
    %1478 = vmatprep.subr.bf16.mxu0 0
    %1479 = vmatpush1.bf16.msra.mxu0 0
    %1480 = vmatprep.subr.bf16.mxu0 0
    %1481 = vmatpush1.bf16.msra.mxu0 0
    %1482 = vmatprep.subr.bf16.mxu0 0
    %1483 = vmatpush1.bf16.msra.mxu0 0
    %1484 = vmatprep.subr.bf16.mxu0 0
    %1485 = vmatpush1.bf16.msra.mxu0 0
    %1486 = vmatprep.subr.bf16.mxu0 0
    %1487 = vmatpush1.bf16.msra.mxu0 0
    %1488 = vmatprep.subr.bf16.mxu0 0
    %1489 = vmatpush1.bf16.msra.mxu0 0
    %1490 = vmatprep.subr.bf16.mxu0 0
    %1491 = vmatpush1.bf16.msra.mxu0 0
    %1492 = vmatprep.subr.bf16.mxu0 0
    %1493 = vmatpush1.bf16.msra.mxu0 0
    %1494 = vmatprep.subr.bf16.mxu0 0
    %1495 = vmatpush1.bf16.msra.mxu0 0
    %1496 = vmatprep.subr.bf16.mxu0 0
    %1497 = vmatpush1.bf16.msra.mxu0 0
    %1498 = vmatprep.subr.bf16.mxu0 0
    %1499 = vmatpush1.bf16.msra.mxu0 0
    %1500 = vmatprep.subr.bf16.mxu0 0
    %1501 = vmatpush1.bf16.msra.mxu0 0
    %1502 = vmatprep.subr.bf16.mxu0 0
    %1503 = vmatpush1.bf16.msra.mxu0 0
    %1504 = vmatprep.subr.bf16.mxu0 0
    %1505 = vmatpush1.bf16.msra.mxu0 0
    %1506 = vmatprep.mubr.bf16.mxu0 0
    %1507 = vmatmul.mubr.bf16.gmra.mrb[0].mxu0 %v1472
    %v1508 = vpop.f32.mrb[0].mxu0
    %v1509 = vadd.f32 0.0, %v1508
    %v1510 = vpop.f32.mrb[0].mxu0
    %v1511 = vpop.f32.mrb[0].mxu0
    %v1512 = vpop.f32.mrb[0].mxu0
    %1513 = vdwg.mxu0
    %1515 = vrot.lane.b32.xlu0 %v1466, 64
    %v1516 = vpop.permute.xlu0 %1515
    %v1518 = vsel %vm65, %v1516, 0
    %1520 = vmatprep.subr.bf16.mxu0 0
    %1521 = vmatpush1.bf16.msra.mxu0 %v210
    %1522 = vmatprep.subr.bf16.mxu0 0
    %1523 = vmatpush1.bf16.msra.mxu0 %v211
    %1524 = vmatprep.subr.bf16.mxu0 0
    %1525 = vmatpush1.bf16.msra.mxu0 0
    %1526 = vmatprep.subr.bf16.mxu0 0
    %1527 = vmatpush1.bf16.msra.mxu0 0
    %1528 = vmatprep.subr.bf16.mxu0 0
    %1529 = vmatpush1.bf16.msra.mxu0 0
    %1530 = vmatprep.subr.bf16.mxu0 0
    %1531 = vmatpush1.bf16.msra.mxu0 0
    %1532 = vmatprep.subr.bf16.mxu0 0
    %1533 = vmatpush1.bf16.msra.mxu0 0
    %1534 = vmatprep.subr.bf16.mxu0 0
    %1535 = vmatpush1.bf16.msra.mxu0 0
    %1536 = vmatprep.subr.bf16.mxu0 0
    %1537 = vmatpush1.bf16.msra.mxu0 0
    %1538 = vmatprep.subr.bf16.mxu0 0
    %1539 = vmatpush1.bf16.msra.mxu0 0
    %1540 = vmatprep.subr.bf16.mxu0 0
    %1541 = vmatpush1.bf16.msra.mxu0 0
    %1542 = vmatprep.subr.bf16.mxu0 0
    %1543 = vmatpush1.bf16.msra.mxu0 0
    %1544 = vmatprep.subr.bf16.mxu0 0
    %1545 = vmatpush1.bf16.msra.mxu0 0
    %1546 = vmatprep.subr.bf16.mxu0 0
    %1547 = vmatpush1.bf16.msra.mxu0 0
    %1548 = vmatprep.subr.bf16.mxu0 0
    %1549 = vmatpush1.bf16.msra.mxu0 0
    %1550 = vmatprep.subr.bf16.mxu0 0
    %1551 = vmatpush1.bf16.msra.mxu0 0
    %1552 = vmatprep.mubr.bf16.mxu0 0
    %1553 = vmatmul.mubr.bf16.gmra.mrb[0].mxu0 %v1518
    %v1554 = vpop.f32.mrb[0].mxu0
    %v1555 = vadd.f32 %v1509, %v1554
    %v1556 = vpop.f32.mrb[0].mxu0
    %v1557 = vpop.f32.mrb[0].mxu0
    %v1558 = vpop.f32.mrb[0].mxu0
    %1559 = vdwg.mxu0
    %v1560 = vadd.f32 %v1555, %v46
    %v1561 = vxor.u32 %v1560, 2147483648
    %v1562 = vmul.f32 %v1561, 1.442695
    %v1563 = vpow.pop %v1562
    %v1564 = vadd.f32 %v1563, 1.0
    %v1565 = vrcp.pop %v1564
    %v1566 = vmul.f32 1.0, %v1565
    %v1567 = vtanh.pop %v1560
    %v1568 = vmul.f32 %v1566, %v1393
    %1570 = vrot.lane.b32.xlu0 %v1567, 32
    %v1571 = vpop.permute.xlu0 %1570
    %v1573 = vmul.f32 %v1566, %v1571
    %1575 = vrot.lane.b32.xlu0 %v1573, 32
    %v1576 = vpop.permute.xlu0 %1575
    %v1578 = vadd.f32 %v1568, %v1576
    %v1579 = vtanh.pop %v1578
    %1581 = vrot.lane.b32.xlu0 %v1579, 32
    %v1582 = vpop.permute.xlu0 %1581
    %v1584 = vmul.f32 %v1566, %v1582
    %1586 = vrot.lane.b32.xlu0 %v1465, 64
    %v1587 = vpop.permute.xlu0 %1586
    %vm1589 = vcmask 253952
    %1590 = vst.msk [vmem:[#allocation2] sm:$0x1] %vm1589, %v1587
    %1592 = vrot.lane.b32.xlu0 %v1459, 96
    %v1593 = vpop.permute.xlu0 %1592
    %1595 = vst.msk [vmem:[#allocation3] sm:$0x1] %vm1589, %v1593
    %1597 = vrot.lane.b32.xlu0 %v1584, 64
    %v1598 = vpop.permute.xlu0 %1597
    %1600 = vst.msk [vmem:[#allocation4] sm:$0x1] %vm1589, %v1598
    %1602 = vrot.lane.b32.xlu0 %v1578, 96
    %v1603 = vpop.permute.xlu0 %1602
    %1605 = vst.msk [vmem:[#allocation5] sm:$0x1] %vm1589, %v1603
    // Predicated region
    $region26: #{elstm_forward.1} parent=1 // pred_check
      %p1606 = pneg %p25
    $region27: #{elstm_forward.1} parent=1 // pred_check_branch
      %1608 = sbr.rel (%p1606) target = $region29
    $region28: #{elstm_forward.1} parent=1 // pred_region
      %1609 = vst.msk [vmem:[#allocation6] sm:$0x1] %vm1589, %v1587
      %1610 = vst.msk [vmem:[#allocation6 + $0x1] sm:$0x1] %vm1589, %v1598
      %1611 = vst.msk [vmem:[#allocation8] sm:$0x1] %vm1589, %v1593
      %1612 = vst.msk [vmem:[#allocation8 + $0x1] sm:$0x1] %vm1589, %v1603
    $region29: #{elstm_forward.1} parent=1 // pred_fallthru
      _
    // Predicated region
    $region30: #{elstm_forward.1} parent=1 // pred_check
      _
    $region31: #{elstm_forward.1} parent=1 // pred_check_branch
      %1614 = sbr.rel (0) target = $region33
    $region32: #{elstm_forward.1} parent=1 // pred_region
      %s1616 = ssub.s32 32, 32
      %1617 = vsyncadd [#allocation7], %s1616
      %s1619 = sshll.u32 [#allocation6], 4
      %s1620 = int_to_ptr.vmem [resolvable:$true] %s1619
      %1622 = dma.vmem_to_hbm [thread:$0]  %s1620, 32, %s5, [#allocation7]
    $region33: #{elstm_forward.1} parent=1 // pred_fallthru
      _
    // Predicated region
    $region34: #{elstm_forward.1} parent=1 // pred_check
      _
    $region35: #{elstm_forward.1} parent=1 // pred_check_branch
      %1624 = sbr.rel (0) target = $region37
    $region36: #{elstm_forward.1} parent=1 // pred_region
      %s1626 = ssub.s32 32, 32
      %1627 = vsyncadd [#allocation9], %s1626
      %s1629 = sshll.u32 [#allocation8], 4
      %s1630 = int_to_ptr.vmem [resolvable:$true] %s1629
      %1632 = dma.vmem_to_hbm [thread:$0]  %s1630, 32, %s6, [#allocation9]
    $region37: #{elstm_forward.1} parent=1 // pred_fallthru
      _
    // Predicated region
    $region38: #{elstm_forward.1} parent=1 // pred_check
      _
    $region39: #{elstm_forward.1} parent=1 // pred_check_branch
      %1634 = sbr.rel (0) target = $region41
    $region40: #{elstm_forward.1} parent=1 // pred_region
      %1635 = dma.done [#allocation7], 32
    $region41: #{elstm_forward.1} parent=1 // pred_fallthru
      _
    // Predicated region
    $region42: #{elstm_forward.1} parent=1 // pred_check
      _
    $region43: #{elstm_forward.1} parent=1 // pred_check_branch
      %1637 = sbr.rel (0) target = $region45
    $region44: #{elstm_forward.1} parent=1 // pred_region
      %1638 = dma.done [#allocation9], 32
    $region45: #{elstm_forward.1} parent=1 // pred_fallthru
      _
    %1639 = vsyncpa [#allocation7], 1
    %1640 = vsyncpa [#allocation9], 1

</llo_original>
